<compile_context>
chip_gen: v6e
topology: v6e:2x2x1
jax: 0.10.0
libtpu: 0.0.40
codegen_flags: <defaults>
</compile_context>

<pallas_src>
import jax
import jax.numpy as jnp
from jax.experimental import pallas as pl
from jax.experimental.pallas import tpu as pltpu

_LANES = 128          # points per output row (one full lane group)
_GROUP = 3            # coordinates per point
_ROW_W = _GROUP * _LANES   # 384 flat values per row


def _round_up(x: int, m: int) -> int:
    return ((x + m - 1) // m) * m


def _make_selection_matrix():
    """S[c, t] = 1.0 iff flat-offset c belongs to point t within a row."""
    c = jnp.arange(_ROW_W)[:, None]          # (384, 1)
    t = jnp.arange(_LANES)[None, :]          # (1, 128)
    return (c // _GROUP == t).astype(jnp.float32)   # (384, 128)


def _point_error_kernel(in_ref, tgt_ref, sel_ref, out_ref):
    # in_ref, tgt_ref: (TB, 384) tiles (point-major interleaved coords).
    # sel_ref: (384, 128) constant selection matrix.
    # out_ref: (TB, 128) float32 per-point errors.
    d = in_ref[...].astype(jnp.float32) - tgt_ref[...].astype(jnp.float32)
    sq = d * d                                   # VPU elementwise
    # Reduce-over-3-coords + lane compaction in one MXU matmul (exact: S is 0/1).
    ssq = jnp.dot(
        sq, sel_ref[...],
        precision=jax.lax.Precision.HIGHEST,
        preferred_element_type=jnp.float32,
    )
    out_ref[...] = jnp.sqrt(ssq)                 # EUP


def point_error_pallas(input_points, target_points, *, tile_rows=1024):
    """PointError.forward with identity alignment.

    input_points, target_points: (..., 3) -> (...,) float32 Euclidean errors.
    """
    assert input_points.shape == target_points.shape
    assert input_points.shape[-1] == _GROUP
    out_batch_shape = input_points.shape[:-1]
    N = 1
    for s in out_batch_shape:
        N *= s

    # Pick tiles: lane rows of 128 points; sublane tile a multiple of 8,
    # shrunk for small problems so padding stays bounded.
    rows_needed = max(1, pl.cdiv(N, _LANES))
    tile_rows = max(8, _round_up(min(tile_rows, _round_up(rows_needed, 8)), 8))
    num_blocks = pl.cdiv(rows_needed, tile_rows)
    rows = num_blocks * tile_rows
    n_pad = rows * _LANES

    flat_in = input_points.reshape(-1)           # contiguous collapse: free
    flat_tgt = target_points.reshape(-1)
    pad = _GROUP * (n_pad - N)
    if pad:
        # zero-padded tail -> diff 0 -> error 0, sliced off below
        flat_in = jnp.pad(flat_in, (0, pad))
        flat_tgt = jnp.pad(flat_tgt, (0, pad))

    in2d = flat_in.reshape(rows, _ROW_W)         # contiguous collapse: free
    tgt2d = flat_tgt.reshape(rows, _ROW_W)
    sel = _make_selection_matrix()

    in_spec = pl.BlockSpec((tile_rows, _ROW_W), lambda i: (i, 0))
    sel_spec = pl.BlockSpec((_ROW_W, _LANES), lambda i: (0, 0))  # fetched once
    out_spec = pl.BlockSpec((tile_rows, _LANES), lambda i: (i, 0))

    out = pl.pallas_call(
        _point_error_kernel,
        out_shape=jax.ShapeDtypeStruct((rows, _LANES), jnp.float32),
        grid_spec=pltpu.PrefetchScalarGridSpec(
            num_scalar_prefetch=0,
            grid=(num_blocks,),
            in_specs=[in_spec, in_spec, sel_spec],
            out_specs=out_spec,
        ),
        compiler_params=pltpu.CompilerParams(
            dimension_semantics=("parallel",),   # megacore sharding on v7x
        ),
    )(in2d, tgt2d, sel)

    return out.reshape(n_pad)[:N].reshape(out_batch_shape)


if __name__ == "__main__":
    key = jax.random.PRNGKey(0)
    k1, k2, k3, k4 = jax.random.split(key, 4)

    # Small shapes consistent with the module's (B, P, 3) contract.
    B, P = 2, 128
    input_points = jax.random.normal(k1, (B, P, 3), dtype=jnp.float32)
    target_points = jax.random.normal(k2, (B, P, 3), dtype=jnp.float32)

    err = jax.block_until_ready(point_error_pallas(input_points, target_points))
    ref = jnp.sqrt(jnp.sum((input_points - target_points) ** 2, axis=-1))
    assert err.shape == (B, P)
    assert jnp.allclose(err, ref, atol=1e-5, rtol=1e-5)

    # Exercise the padded / non-multiple-of-tile path with odd P and bf16 inputs.
    B2, P2 = 3, 1000
    ip2 = jax.random.normal(k3, (B2, P2, 3), dtype=jnp.bfloat16)
    tp2 = jax.random.normal(k4, (B2, P2, 3), dtype=jnp.bfloat16)
    err2 = jax.block_until_ready(point_error_pallas(ip2, tp2))
    ref2 = jnp.sqrt(jnp.sum(
        (ip2.astype(jnp.float32) - tp2.astype(jnp.float32)) ** 2, axis=-1))
    assert err2.shape == (B2, P2)
    assert jnp.allclose(err2, ref2, atol=1e-3, rtol=1e-3)

    print("KERNEL_OK")
</pallas_src>

<mosaic_0001>
module attributes {stable_mosaic.version = 11 : i64} {
  func.func @_point_error_kernel(%arg0: i32, %arg1: memref<8x384xf32, #tpu.memory_space<vmem>>, %arg2: memref<8x384xf32, #tpu.memory_space<vmem>>, %arg3: memref<384x128xf32, #tpu.memory_space<vmem>>, %arg4: memref<8x128xf32, #tpu.memory_space<vmem>>) attributes {dimension_semantics = [#tpu.dimension_semantics<parallel>], iteration_bounds = array<i64: 1>, scalar_prefetch = 0 : i64, scratch_operands = 0 : i64, tpu.core_type = #tpu.core_type<tc>, window_params = [{transform_indices = @transform_0, window_bounds = array<i64: 8, 384>}, {transform_indices = @transform_1, window_bounds = array<i64: 8, 384>}, {pipeline_mode = #tpu.pipeline_mode<synchronous>, transform_indices = @transform_2, window_bounds = array<i64: 384, 128>}, {transform_indices = @transform_3, window_bounds = array<i64: 8, 128>}]} {
    %c0 = arith.constant 0 : index
    %c0_0 = arith.constant 0 : index
    %0 = vector.load %arg1[%c0, %c0_0] : memref<8x384xf32, #tpu.memory_space<vmem>>, vector<8x384xf32>
    %c0_1 = arith.constant 0 : index
    %c0_2 = arith.constant 0 : index
    %1 = vector.load %arg2[%c0_1, %c0_2] : memref<8x384xf32, #tpu.memory_space<vmem>>, vector<8x384xf32>
    %2 = arith.subf %0, %1 : vector<8x384xf32>
    %3 = arith.mulf %2, %2 : vector<8x384xf32>
    %c0_3 = arith.constant 0 : index
    %c0_4 = arith.constant 0 : index
    %4 = vector.load %arg3[%c0_3, %c0_4] : memref<384x128xf32, #tpu.memory_space<vmem>>, vector<384x128xf32>
    %cst = arith.constant dense<0.000000e+00> : vector<8x128xf32>
    %5 = tpu.matmul %3, %4, %cst {dimension_numbers = #tpu.dot_dimension_numbers<[1], [0], [0], [1], [0, 0, 1, 1], [], []>, precision = #tpu.contract_precision<fp32>} : vector<8x384xf32>, vector<384x128xf32>, vector<8x128xf32> -> vector<8x128xf32>
    %6 = math.sqrt %5 : vector<8x128xf32>
    %c0_5 = arith.constant 0 : index
    %c0_6 = arith.constant 0 : index
    %7 = vector.load %arg4[%c0_5, %c0_6] : memref<8x128xf32, #tpu.memory_space<vmem>>, vector<8x128xf32>
    tpu.vector_store %arg4[%c0_5, %c0_6], %6 {strides = array<i32>} : memref<8x128xf32, #tpu.memory_space<vmem>>, vector<8x128xf32>,
    return
  }
  func.func @transform_0(%arg0: i32) -> (i32, i32) {
    %c0_i32 = arith.constant 0 : i32
    %c0_i32_0 = arith.constant 0 : i32
    return %arg0, %c0_i32 : i32, i32
  }
  func.func @transform_1(%arg0: i32) -> (i32, i32) {
    %c0_i32 = arith.constant 0 : i32
    %c0_i32_0 = arith.constant 0 : i32
    return %arg0, %c0_i32 : i32, i32
  }
  func.func @transform_2(%arg0: i32) -> (i32, i32) {
    %c0_i32 = arith.constant 0 : i32
    %c0_i32_0 = arith.constant 0 : i32
    %c0_i32_1 = arith.constant 0 : i32
    return %c0_i32, %c0_i32_0 : i32, i32
  }
  func.func @transform_3(%arg0: i32) -> (i32, i32) {
    %c0_i32 = arith.constant 0 : i32
    %c0_i32_0 = arith.constant 0 : i32
    return %arg0, %c0_i32 : i32, i32
  }
}

</mosaic_0001>

<llo_original>
// kernel: tpu_custom_call.1
$region0: #{tpu_custom_call.1}
  #allocation0 [shape = 'u32[]', space=smem, size = 0x4, offset = 0x4, fixed_abs, tag = 'smem constant byte address 0x4 - core index']
  #allocation1 [shape = 'u32[144,128]{1,0:T(1,128)}', space=vmem, size = 0x12000, scoped, tag = 'internal scratch']
  %s0 = inlined_call_operand.hbm [shape: f32[8,384], index: 0, kind: input, shape index: {}]
  %s1 = inlined_call_operand.hbm [shape: f32[8,384], index: 1, kind: input, shape index: {}]
  %s2 = inlined_call_operand.hbm [shape: f32[384,128], index: 2, kind: input, shape index: {}]
  %s3 = inlined_call_operand.hbm [shape: f32[8,128], index: 3, kind: output, shape index: {}]
  %s4 = sld [smem:[#allocation0]]
  $region34: #{tpu_custom_call.1} parent=0
    _
  %s6 = ssub.s32 1, %s4
  %s7 = scalar_select 0, %s6, %s4
  $region1: #{tpu_custom_call.1} parent=0
    #allocation2 [shape = 'u8[12288]{0}', space=vmem, size = 0x3000, scoped, tag = 'input window, operand 0, single buffered']
    #allocation3 [shape = 's32[1]{0}', space=sflag, size = 0x4, scoped, tag = 'scoped memory for tpu_custom_call.1']
    #allocation4 [shape = 's32[1]{0}', space=sflag, size = 0x4, scoped, tag = 'scoped memory for tpu_custom_call.1']
    #allocation5 [shape = 'u8[12288]{0}', space=vmem, size = 0x3000, scoped, tag = 'input window, operand 1, single buffered']
    #allocation6 [shape = 's32[1]{0}', space=sflag, size = 0x4, scoped, tag = 'scoped memory for tpu_custom_call.1']
    #allocation7 [shape = 'u8[196608]{0}', space=vmem, size = 0x30000, scoped, tag = 'input window, operand 2, single buffered']
    #allocation8 [shape = 'u8[4096]{0}', space=vmem, size = 0x1000, scoped, tag = 'output window, operand 0, single buffered']
    %8 = vsyncpa [#allocation3], 0
    %9 = vsyncpa [#allocation6], 0
    %10 = vsyncpa [#allocation4], 0
    // Predicated region
    $region2: #{tpu_custom_call.1} parent=1 // pred_check
      _
    $region3: #{tpu_custom_call.1} parent=1 // pred_check_branch
      %12 = sbr.rel (0) target = $region5
    $region4: #{tpu_custom_call.1} parent=1 // pred_region
      %s14 = ssub.s32 384, 384
      %15 = vsyncadd [#allocation3], %s14
      %s17 = sshll.u32 [#allocation2], 4
      %s18 = int_to_ptr.vmem [resolvable:$true] %s17
      %20 = dma.hbm_to_vmem [thread:$0]  %s0, 384, %s18, [#allocation3]
    $region5: #{tpu_custom_call.1} parent=1 // pred_fallthru
      _
    // Predicated region
    $region6: #{tpu_custom_call.1} parent=1 // pred_check
      _
    $region7: #{tpu_custom_call.1} parent=1 // pred_check_branch
      %22 = sbr.rel (0) target = $region9
    $region8: #{tpu_custom_call.1} parent=1 // pred_region
      %s24 = ssub.s32 384, 384
      %25 = vsyncadd [#allocation6], %s24
      %s27 = sshll.u32 [#allocation5], 4
      %s28 = int_to_ptr.vmem [resolvable:$true] %s27
      %30 = dma.hbm_to_vmem [thread:$0]  %s1, 384, %s28, [#allocation6]
    $region9: #{tpu_custom_call.1} parent=1 // pred_fallthru
      _
    // Predicated region
    $region10: #{tpu_custom_call.1} parent=1 // pred_check
      _
    $region11: #{tpu_custom_call.1} parent=1 // pred_check_branch
      %32 = sbr.rel (0) target = $region13
    $region12: #{tpu_custom_call.1} parent=1 // pred_region
      %s34 = ssub.s32 6144, 6144
      %35 = vsyncadd [#allocation6], %s34
      %s36 = sshll.u32 [#allocation7], 4
      %s37 = int_to_ptr.vmem [resolvable:$true] %s36
      %42 = dma.hbm_to_vmem [thread:$0]  %s2, 6144, %s37, [#allocation6], 128, 128, 8
    $region13: #{tpu_custom_call.1} parent=1 // pred_fallthru
      _
    // Predicated region
    $region14: #{tpu_custom_call.1} parent=1 // pred_check
      _
    $region15: #{tpu_custom_call.1} parent=1 // pred_check_branch
      %44 = sbr.rel (0) target = $region17
    $region16: #{tpu_custom_call.1} parent=1 // pred_region
      %45 = dma.done [#allocation3], 384
    $region17: #{tpu_custom_call.1} parent=1 // pred_fallthru
      _
    // Predicated region
    $region18: #{tpu_custom_call.1} parent=1 // pred_check
      _
    $region19: #{tpu_custom_call.1} parent=1 // pred_check_branch
      %47 = sbr.rel (0) target = $region21
    $region20: #{tpu_custom_call.1} parent=1 // pred_region
      %48 = dma.done [#allocation6], 384
    $region21: #{tpu_custom_call.1} parent=1 // pred_fallthru
      _
    // Predicated region
    $region22: #{tpu_custom_call.1} parent=1 // pred_check
      _
    $region23: #{tpu_custom_call.1} parent=1 // pred_check_branch
      %50 = sbr.rel (0) target = $region25
    $region24: #{tpu_custom_call.1} parent=1 // pred_region
      %51 = dma.done [#allocation6], 6144
    $region25: #{tpu_custom_call.1} parent=1 // pred_fallthru
      _
    %v52 = vld [vmem:[#allocation2] sm:$0xff]
    %v53 = vld [vmem:[#allocation2 + $0x8] sm:$0xff]
    %v54 = vld [vmem:[#allocation2 + $0x10] sm:$0xff]
    %v55 = vld [vmem:[#allocation5] sm:$0xff]
    %v56 = vld [vmem:[#allocation5 + $0x8] sm:$0xff]
    %v57 = vld [vmem:[#allocation5 + $0x10] sm:$0xff]
    %v58 = vsub.f32 %v52, %v55
    %v59 = vsub.f32 %v53, %v56
    %v60 = vsub.f32 %v54, %v57
    %v61 = vmul.f32 %v58, %v58
    %v62 = vmul.f32 %v59, %v59
    %v63 = vmul.f32 %v60, %v60
    %v64 = vld [vmem:[#allocation7] sm:$0xff]
    %v65 = vld [vmem:[#allocation7 + $0x8] sm:$0xff]
    %v66 = vld [vmem:[#allocation7 + $0x10] sm:$0xff]
    %v67 = vld [vmem:[#allocation7 + $0x18] sm:$0xff]
    %v68 = vld [vmem:[#allocation7 + $0x20] sm:$0xff]
    %v69 = vld [vmem:[#allocation7 + $0x28] sm:$0xff]
    %v70 = vld [vmem:[#allocation7 + $0x30] sm:$0xff]
    %v71 = vld [vmem:[#allocation7 + $0x38] sm:$0xff]
    %v72 = vld [vmem:[#allocation7 + $0x40] sm:$0xff]
    %v73 = vld [vmem:[#allocation7 + $0x48] sm:$0xff]
    %v74 = vld [vmem:[#allocation7 + $0x50] sm:$0xff]
    %v75 = vld [vmem:[#allocation7 + $0x58] sm:$0xff]
    %v76 = vld [vmem:[#allocation7 + $0x60] sm:$0xff]
    %v77 = vld [vmem:[#allocation7 + $0x68] sm:$0xff]
    %v78 = vld [vmem:[#allocation7 + $0x70] sm:$0xff]
    %v79 = vld [vmem:[#allocation7 + $0x78] sm:$0xff]
    %v80 = vld [vmem:[#allocation7 + $0x80] sm:$0xff]
    %v81 = vld [vmem:[#allocation7 + $0x88] sm:$0xff]
    %v82 = vld [vmem:[#allocation7 + $0x90] sm:$0xff]
    %v83 = vld [vmem:[#allocation7 + $0x98] sm:$0xff]
    %v84 = vld [vmem:[#allocation7 + $0xa0] sm:$0xff]
    %v85 = vld [vmem:[#allocation7 + $0xa8] sm:$0xff]
    %v86 = vld [vmem:[#allocation7 + $0xb0] sm:$0xff]
    %v87 = vld [vmem:[#allocation7 + $0xb8] sm:$0xff]
    %v88 = vld [vmem:[#allocation7 + $0xc0] sm:$0xff]
    %v89 = vld [vmem:[#allocation7 + $0xc8] sm:$0xff]
    %v90 = vld [vmem:[#allocation7 + $0xd0] sm:$0xff]
    %v91 = vld [vmem:[#allocation7 + $0xd8] sm:$0xff]
    %v92 = vld [vmem:[#allocation7 + $0xe0] sm:$0xff]
    %v93 = vld [vmem:[#allocation7 + $0xe8] sm:$0xff]
    %v94 = vld [vmem:[#allocation7 + $0xf0] sm:$0xff]
    %v95 = vld [vmem:[#allocation7 + $0xf8] sm:$0xff]
    %v96 = vld [vmem:[#allocation7 + $0x100] sm:$0xff]
    %v97 = vld [vmem:[#allocation7 + $0x108] sm:$0xff]
    %v98 = vld [vmem:[#allocation7 + $0x110] sm:$0xff]
    %v99 = vld [vmem:[#allocation7 + $0x118] sm:$0xff]
    %v100 = vld [vmem:[#allocation7 + $0x120] sm:$0xff]
    %v101 = vld [vmem:[#allocation7 + $0x128] sm:$0xff]
    %v102 = vld [vmem:[#allocation7 + $0x130] sm:$0xff]
    %v103 = vld [vmem:[#allocation7 + $0x138] sm:$0xff]
    %v104 = vld [vmem:[#allocation7 + $0x140] sm:$0xff]
    %v105 = vld [vmem:[#allocation7 + $0x148] sm:$0xff]
    %v106 = vld [vmem:[#allocation7 + $0x150] sm:$0xff]
    %v107 = vld [vmem:[#allocation7 + $0x158] sm:$0xff]
    %v108 = vld [vmem:[#allocation7 + $0x160] sm:$0xff]
    %v109 = vld [vmem:[#allocation7 + $0x168] sm:$0xff]
    %v110 = vld [vmem:[#allocation7 + $0x170] sm:$0xff]
    %v111 = vld [vmem:[#allocation7 + $0x178] sm:$0xff]
    %112 = vmatprep.subr.mxu0 0.0
    %v113 = vand.u32 %v79, 4294901760
    %114 = vmatpush1.msra.mxu0 %v113
    %115 = vmatprep.subr.mxu0 0.0
    %v116 = vand.u32 %v78, 4294901760
    %117 = vmatpush1.msra.mxu0 %v116
    %118 = vmatprep.subr.mxu0 0.0
    %v119 = vand.u32 %v77, 4294901760
    %120 = vmatpush1.msra.mxu0 %v119
    %121 = vmatprep.subr.mxu0 0.0
    %v122 = vand.u32 %v76, 4294901760
    %123 = vmatpush1.msra.mxu0 %v122
    %124 = vmatprep.subr.mxu0 0.0
    %v125 = vand.u32 %v75, 4294901760
    %126 = vmatpush1.msra.mxu0 %v125
    %127 = vmatprep.subr.mxu0 0.0
    %v128 = vand.u32 %v74, 4294901760
    %129 = vmatpush1.msra.mxu0 %v128
    %130 = vmatprep.subr.mxu0 0.0
    %v131 = vand.u32 %v73, 4294901760
    %132 = vmatpush1.msra.mxu0 %v131
    %133 = vmatprep.subr.mxu0 0.0
    %v134 = vand.u32 %v72, 4294901760
    %135 = vmatpush1.msra.mxu0 %v134
    %136 = vmatprep.subr.mxu0 0.0
    %v137 = vand.u32 %v71, 4294901760
    %138 = vmatpush1.msra.mxu0 %v137
    %139 = vmatprep.subr.mxu0 0.0
    %v140 = vand.u32 %v70, 4294901760
    %141 = vmatpush1.msra.mxu0 %v140
    %142 = vmatprep.subr.mxu0 0.0
    %v143 = vand.u32 %v69, 4294901760
    %144 = vmatpush1.msra.mxu0 %v143
    %145 = vmatprep.subr.mxu0 0.0
    %v146 = vand.u32 %v68, 4294901760
    %147 = vmatpush1.msra.mxu0 %v146
    %148 = vmatprep.subr.mxu0 0.0
    %v149 = vand.u32 %v67, 4294901760
    %150 = vmatpush1.msra.mxu0 %v149
    %151 = vmatprep.subr.mxu0 0.0
    %v152 = vand.u32 %v66, 4294901760
    %153 = vmatpush1.msra.mxu0 %v152
    %154 = vmatprep.subr.mxu0 0.0
    %v155 = vand.u32 %v65, 4294901760
    %156 = vmatpush1.msra.mxu0 %v155
    %157 = vmatprep.subr.mxu0 0.0
    %v158 = vand.u32 %v64, 4294901760
    %159 = vmatpush1.msra.mxu0 %v158
    %160 = vmatprep.subr.mxu0 0.0
    %v161 = vand.u32 %v95, 4294901760
    %162 = vmatpush2.msra.mxu0 %v161
    %163 = vmatprep.subr.mxu0 0.0
    %v164 = vand.u32 %v94, 4294901760
    %165 = vmatpush2.msra.mxu0 %v164
    %166 = vmatprep.subr.mxu0 0.0
    %v167 = vand.u32 %v93, 4294901760
    %168 = vmatpush2.msra.mxu0 %v167
    %169 = vmatprep.subr.mxu0 0.0
    %v170 = vand.u32 %v92, 4294901760
    %171 = vmatpush2.msra.mxu0 %v170
    %172 = vmatprep.subr.mxu0 0.0
    %v173 = vand.u32 %v91, 4294901760
    %174 = vmatpush2.msra.mxu0 %v173
    %175 = vmatprep.subr.mxu0 0.0
    %v176 = vand.u32 %v90, 4294901760
    %177 = vmatpush2.msra.mxu0 %v176
    %178 = vmatprep.subr.mxu0 0.0
    %v179 = vand.u32 %v89, 4294901760
    %180 = vmatpush2.msra.mxu0 %v179
    %181 = vmatprep.subr.mxu0 0.0
    %v182 = vand.u32 %v88, 4294901760
    %183 = vmatpush2.msra.mxu0 %v182
    %184 = vmatprep.subr.mxu0 0.0
    %v185 = vand.u32 %v87, 4294901760
    %186 = vmatpush2.msra.mxu0 %v185
    %187 = vmatprep.subr.mxu0 0.0
    %v188 = vand.u32 %v86, 4294901760
    %189 = vmatpush2.msra.mxu0 %v188
    %190 = vmatprep.subr.mxu0 0.0
    %v191 = vand.u32 %v85, 4294901760
    %192 = vmatpush2.msra.mxu0 %v191
    %193 = vmatprep.subr.mxu0 0.0
    %v194 = vand.u32 %v84, 4294901760
    %195 = vmatpush2.msra.mxu0 %v194
    %196 = vmatprep.subr.mxu0 0.0
    %v197 = vand.u32 %v83, 4294901760
    %198 = vmatpush2.msra.mxu0 %v197
    %199 = vmatprep.subr.mxu0 0.0
    %v200 = vand.u32 %v82, 4294901760
    %201 = vmatpush2.msra.mxu0 %v200
    %202 = vmatprep.subr.mxu0 0.0
    %v203 = vand.u32 %v81, 4294901760
    %204 = vmatpush2.msra.mxu0 %v203
    %205 = vmatprep.subr.mxu0 0.0
    %v206 = vand.u32 %v80, 4294901760
    %207 = vmatpush2.msra.mxu0 %v206
    %v208 = vand.u32 %v62, 4294901760
    %v209 = vsub.f32 %v62, %v208
    %v210 = vand.u32 %v209, 4294901760
    %v211 = vsub.f32 %v209, %v210
    %v212 = vand.u32 %v211, 4294901760
    %213 = vmatprep.mubr.f32.mxu0 %v212
    %v214 = vand.u32 %v61, 4294901760
    %v215 = vsub.f32 %v61, %v214
    %v216 = vand.u32 %v215, 4294901760
    %v217 = vsub.f32 %v215, %v216
    %v218 = vand.u32 %v217, 4294901760
    %219 = vmatmul.mubr.f32.gmra.mxu0 %v218
    %v220 = vpop.f32.mrf.mxu0
    %v221 = vadd.f32 0.0, %v220
    %v222 = vpop.f32.mrf.mxu0
    %223 = vdwg.mxu0
    %224 = vmatprep.subr.mxu0 0.0
    %v225 = vand.u32 %v79, 4294901760
    %v226 = vsub.f32 %v79, %v225
    %v227 = vand.u32 %v226, 4294901760
    %v228 = vsub.f32 %v226, %v227
    %v229 = vand.u32 %v228, 4294901760
    %230 = vmatpush1.msra.mxu0 %v229
    %231 = vmatprep.subr.mxu0 0.0
    %v232 = vand.u32 %v78, 4294901760
    %v233 = vsub.f32 %v78, %v232
    %v234 = vand.u32 %v233, 4294901760
    %v235 = vsub.f32 %v233, %v234
    %v236 = vand.u32 %v235, 4294901760
    %237 = vmatpush1.msra.mxu0 %v236
    %238 = vmatprep.subr.mxu0 0.0
    %v239 = vand.u32 %v77, 4294901760
    %v240 = vsub.f32 %v77, %v239
    %v241 = vand.u32 %v240, 4294901760
    %v242 = vsub.f32 %v240, %v241
    %v243 = vand.u32 %v242, 4294901760
    %244 = vmatpush1.msra.mxu0 %v243
    %245 = vmatprep.subr.mxu0 0.0
    %v246 = vand.u32 %v76, 4294901760
    %v247 = vsub.f32 %v76, %v246
    %v248 = vand.u32 %v247, 4294901760
    %v249 = vsub.f32 %v247, %v248
    %v250 = vand.u32 %v249, 4294901760
    %251 = vmatpush1.msra.mxu0 %v250
    %252 = vmatprep.subr.mxu0 0.0
    %v253 = vand.u32 %v75, 4294901760
    %v254 = vsub.f32 %v75, %v253
    %v255 = vand.u32 %v254, 4294901760
    %v256 = vsub.f32 %v254, %v255
    %v257 = vand.u32 %v256, 4294901760
    %258 = vmatpush1.msra.mxu0 %v257
    %259 = vmatprep.subr.mxu0 0.0
    %v260 = vand.u32 %v74, 4294901760
    %v261 = vsub.f32 %v74, %v260
    %v262 = vand.u32 %v261, 4294901760
    %v263 = vsub.f32 %v261, %v262
    %v264 = vand.u32 %v263, 4294901760
    %265 = vmatpush1.msra.mxu0 %v264
    %266 = vmatprep.subr.mxu0 0.0
    %v267 = vand.u32 %v73, 4294901760
    %v268 = vsub.f32 %v73, %v267
    %v269 = vand.u32 %v268, 4294901760
    %v270 = vsub.f32 %v268, %v269
    %v271 = vand.u32 %v270, 4294901760
    %272 = vmatpush1.msra.mxu0 %v271
    %273 = vmatprep.subr.mxu0 0.0
    %v274 = vand.u32 %v72, 4294901760
    %v275 = vsub.f32 %v72, %v274
    %v276 = vand.u32 %v275, 4294901760
    %v277 = vsub.f32 %v275, %v276
    %v278 = vand.u32 %v277, 4294901760
    %279 = vmatpush1.msra.mxu0 %v278
    %280 = vmatprep.subr.mxu0 0.0
    %v281 = vand.u32 %v71, 4294901760
    %v282 = vsub.f32 %v71, %v281
    %v283 = vand.u32 %v282, 4294901760
    %v284 = vsub.f32 %v282, %v283
    %v285 = vand.u32 %v284, 4294901760
    %286 = vmatpush1.msra.mxu0 %v285
    %287 = vmatprep.subr.mxu0 0.0
    %v288 = vand.u32 %v70, 4294901760
    %v289 = vsub.f32 %v70, %v288
    %v290 = vand.u32 %v289, 4294901760
    %v291 = vsub.f32 %v289, %v290
    %v292 = vand.u32 %v291, 4294901760
    %293 = vmatpush1.msra.mxu0 %v292
    %294 = vmatprep.subr.mxu0 0.0
    %v295 = vand.u32 %v69, 4294901760
    %v296 = vsub.f32 %v69, %v295
    %v297 = vand.u32 %v296, 4294901760
    %v298 = vsub.f32 %v296, %v297
    %v299 = vand.u32 %v298, 4294901760
    %300 = vmatpush1.msra.mxu0 %v299
    %301 = vmatprep.subr.mxu0 0.0
    %v302 = vand.u32 %v68, 4294901760
    %v303 = vsub.f32 %v68, %v302
    %v304 = vand.u32 %v303, 4294901760
    %v305 = vsub.f32 %v303, %v304
    %v306 = vand.u32 %v305, 4294901760
    %307 = vmatpush1.msra.mxu0 %v306
    %308 = vmatprep.subr.mxu0 0.0
    %v309 = vand.u32 %v67, 4294901760
    %v310 = vsub.f32 %v67, %v309
    %v311 = vand.u32 %v310, 4294901760
    %v312 = vsub.f32 %v310, %v311
    %v313 = vand.u32 %v312, 4294901760
    %314 = vmatpush1.msra.mxu0 %v313
    %315 = vmatprep.subr.mxu0 0.0
    %v316 = vand.u32 %v66, 4294901760
    %v317 = vsub.f32 %v66, %v316
    %v318 = vand.u32 %v317, 4294901760
    %v319 = vsub.f32 %v317, %v318
    %v320 = vand.u32 %v319, 4294901760
    %321 = vmatpush1.msra.mxu0 %v320
    %322 = vmatprep.subr.mxu0 0.0
    %v323 = vand.u32 %v65, 4294901760
    %v324 = vsub.f32 %v65, %v323
    %v325 = vand.u32 %v324, 4294901760
    %v326 = vsub.f32 %v324, %v325
    %v327 = vand.u32 %v326, 4294901760
    %328 = vmatpush1.msra.mxu0 %v327
    %329 = vmatprep.subr.mxu0 0.0
    %v330 = vand.u32 %v64, 4294901760
    %v331 = vsub.f32 %v64, %v330
    %v332 = vand.u32 %v331, 4294901760
    %v333 = vsub.f32 %v331, %v332
    %v334 = vand.u32 %v333, 4294901760
    %335 = vmatpush1.msra.mxu0 %v334
    %336 = vmatprep.subr.mxu0 0.0
    %v337 = vand.u32 %v95, 4294901760
    %v338 = vsub.f32 %v95, %v337
    %v339 = vand.u32 %v338, 4294901760
    %v340 = vsub.f32 %v338, %v339
    %v341 = vand.u32 %v340, 4294901760
    %342 = vmatpush2.msra.mxu0 %v341
    %343 = vmatprep.subr.mxu0 0.0
    %v344 = vand.u32 %v94, 4294901760
    %v345 = vsub.f32 %v94, %v344
    %v346 = vand.u32 %v345, 4294901760
    %v347 = vsub.f32 %v345, %v346
    %v348 = vand.u32 %v347, 4294901760
    %349 = vmatpush2.msra.mxu0 %v348
    %350 = vmatprep.subr.mxu0 0.0
    %v351 = vand.u32 %v93, 4294901760
    %v352 = vsub.f32 %v93, %v351
    %v353 = vand.u32 %v352, 4294901760
    %v354 = vsub.f32 %v352, %v353
    %v355 = vand.u32 %v354, 4294901760
    %356 = vmatpush2.msra.mxu0 %v355
    %357 = vmatprep.subr.mxu0 0.0
    %v358 = vand.u32 %v92, 4294901760
    %v359 = vsub.f32 %v92, %v358
    %v360 = vand.u32 %v359, 4294901760
    %v361 = vsub.f32 %v359, %v360
    %v362 = vand.u32 %v361, 4294901760
    %363 = vmatpush2.msra.mxu0 %v362
    %364 = vmatprep.subr.mxu0 0.0
    %v365 = vand.u32 %v91, 4294901760
    %v366 = vsub.f32 %v91, %v365
    %v367 = vand.u32 %v366, 4294901760
    %v368 = vsub.f32 %v366, %v367
    %v369 = vand.u32 %v368, 4294901760
    %370 = vmatpush2.msra.mxu0 %v369
    %371 = vmatprep.subr.mxu0 0.0
    %v372 = vand.u32 %v90, 4294901760
    %v373 = vsub.f32 %v90, %v372
    %v374 = vand.u32 %v373, 4294901760
    %v375 = vsub.f32 %v373, %v374
    %v376 = vand.u32 %v375, 4294901760
    %377 = vmatpush2.msra.mxu0 %v376
    %378 = vmatprep.subr.mxu0 0.0
    %v379 = vand.u32 %v89, 4294901760
    %v380 = vsub.f32 %v89, %v379
    %v381 = vand.u32 %v380, 4294901760
    %v382 = vsub.f32 %v380, %v381
    %v383 = vand.u32 %v382, 4294901760
    %384 = vmatpush2.msra.mxu0 %v383
    %385 = vmatprep.subr.mxu0 0.0
    %v386 = vand.u32 %v88, 4294901760
    %v387 = vsub.f32 %v88, %v386
    %v388 = vand.u32 %v387, 4294901760
    %v389 = vsub.f32 %v387, %v388
    %v390 = vand.u32 %v389, 4294901760
    %391 = vmatpush2.msra.mxu0 %v390
    %392 = vmatprep.subr.mxu0 0.0
    %v393 = vand.u32 %v87, 4294901760
    %v394 = vsub.f32 %v87, %v393
    %v395 = vand.u32 %v394, 4294901760
    %v396 = vsub.f32 %v394, %v395
    %v397 = vand.u32 %v396, 4294901760
    %398 = vmatpush2.msra.mxu0 %v397
    %399 = vmatprep.subr.mxu0 0.0
    %v400 = vand.u32 %v86, 4294901760
    %v401 = vsub.f32 %v86, %v400
    %v402 = vand.u32 %v401, 4294901760
    %v403 = vsub.f32 %v401, %v402
    %v404 = vand.u32 %v403, 4294901760
    %405 = vmatpush2.msra.mxu0 %v404
    %406 = vmatprep.subr.mxu0 0.0
    %v407 = vand.u32 %v85, 4294901760
    %v408 = vsub.f32 %v85, %v407
    %v409 = vand.u32 %v408, 4294901760
    %v410 = vsub.f32 %v408, %v409
    %v411 = vand.u32 %v410, 4294901760
    %412 = vmatpush2.msra.mxu0 %v411
    %413 = vmatprep.subr.mxu0 0.0
    %v414 = vand.u32 %v84, 4294901760
    %v415 = vsub.f32 %v84, %v414
    %v416 = vand.u32 %v415, 4294901760
    %v417 = vsub.f32 %v415, %v416
    %v418 = vand.u32 %v417, 4294901760
    %419 = vmatpush2.msra.mxu0 %v418
    %420 = vmatprep.subr.mxu0 0.0
    %v421 = vand.u32 %v83, 4294901760
    %v422 = vsub.f32 %v83, %v421
    %v423 = vand.u32 %v422, 4294901760
    %v424 = vsub.f32 %v422, %v423
    %v425 = vand.u32 %v424, 4294901760
    %426 = vmatpush2.msra.mxu0 %v425
    %427 = vmatprep.subr.mxu0 0.0
    %v428 = vand.u32 %v82, 4294901760
    %v429 = vsub.f32 %v82, %v428
    %v430 = vand.u32 %v429, 4294901760
    %v431 = vsub.f32 %v429, %v430
    %v432 = vand.u32 %v431, 4294901760
    %433 = vmatpush2.msra.mxu0 %v432
    %434 = vmatprep.subr.mxu0 0.0
    %v435 = vand.u32 %v81, 4294901760
    %v436 = vsub.f32 %v81, %v435
    %v437 = vand.u32 %v436, 4294901760
    %v438 = vsub.f32 %v436, %v437
    %v439 = vand.u32 %v438, 4294901760
    %440 = vmatpush2.msra.mxu0 %v439
    %441 = vmatprep.subr.mxu0 0.0
    %v442 = vand.u32 %v80, 4294901760
    %v443 = vsub.f32 %v80, %v442
    %v444 = vand.u32 %v443, 4294901760
    %v445 = vsub.f32 %v443, %v444
    %v446 = vand.u32 %v445, 4294901760
    %447 = vmatpush2.msra.mxu0 %v446
    %v448 = vand.u32 %v62, 4294901760
    %449 = vmatprep.mubr.f32.mxu0 %v448
    %v450 = vand.u32 %v61, 4294901760
    %451 = vmatmul.mubr.f32.gmra.mxu0 %v450
    %v452 = vpop.f32.mrf.mxu0
    %v453 = vadd.f32 %v221, %v452
    %v454 = vpop.f32.mrf.mxu0
    %455 = vdwg.mxu0
    %456 = vmatprep.subr.mxu0 0.0
    %v457 = vand.u32 %v79, 4294901760
    %v458 = vsub.f32 %v79, %v457
    %459 = vmatpush1.msra.mxu0 %v458
    %460 = vmatprep.subr.mxu0 0.0
    %v461 = vand.u32 %v78, 4294901760
    %v462 = vsub.f32 %v78, %v461
    %463 = vmatpush1.msra.mxu0 %v462
    %464 = vmatprep.subr.mxu0 0.0
    %v465 = vand.u32 %v77, 4294901760
    %v466 = vsub.f32 %v77, %v465
    %467 = vmatpush1.msra.mxu0 %v466
    %468 = vmatprep.subr.mxu0 0.0
    %v469 = vand.u32 %v76, 4294901760
    %v470 = vsub.f32 %v76, %v469
    %471 = vmatpush1.msra.mxu0 %v470
    %472 = vmatprep.subr.mxu0 0.0
    %v473 = vand.u32 %v75, 4294901760
    %v474 = vsub.f32 %v75, %v473
    %475 = vmatpush1.msra.mxu0 %v474
    %476 = vmatprep.subr.mxu0 0.0
    %v477 = vand.u32 %v74, 4294901760
    %v478 = vsub.f32 %v74, %v477
    %479 = vmatpush1.msra.mxu0 %v478
    %480 = vmatprep.subr.mxu0 0.0
    %v481 = vand.u32 %v73, 4294901760
    %v482 = vsub.f32 %v73, %v481
    %483 = vmatpush1.msra.mxu0 %v482
    %484 = vmatprep.subr.mxu0 0.0
    %v485 = vand.u32 %v72, 4294901760
    %v486 = vsub.f32 %v72, %v485
    %487 = vmatpush1.msra.mxu0 %v486
    %488 = vmatprep.subr.mxu0 0.0
    %v489 = vand.u32 %v71, 4294901760
    %v490 = vsub.f32 %v71, %v489
    %491 = vmatpush1.msra.mxu0 %v490
    %492 = vmatprep.subr.mxu0 0.0
    %v493 = vand.u32 %v70, 4294901760
    %v494 = vsub.f32 %v70, %v493
    %495 = vmatpush1.msra.mxu0 %v494
    %496 = vmatprep.subr.mxu0 0.0
    %v497 = vand.u32 %v69, 4294901760
    %v498 = vsub.f32 %v69, %v497
    %499 = vmatpush1.msra.mxu0 %v498
    %500 = vmatprep.subr.mxu0 0.0
    %v501 = vand.u32 %v68, 4294901760
    %v502 = vsub.f32 %v68, %v501
    %503 = vmatpush1.msra.mxu0 %v502
    %504 = vmatprep.subr.mxu0 0.0
    %v505 = vand.u32 %v67, 4294901760
    %v506 = vsub.f32 %v67, %v505
    %507 = vmatpush1.msra.mxu0 %v506
    %508 = vmatprep.subr.mxu0 0.0
    %v509 = vand.u32 %v66, 4294901760
    %v510 = vsub.f32 %v66, %v509
    %511 = vmatpush1.msra.mxu0 %v510
    %512 = vmatprep.subr.mxu0 0.0
    %v513 = vand.u32 %v65, 4294901760
    %v514 = vsub.f32 %v65, %v513
    %515 = vmatpush1.msra.mxu0 %v514
    %516 = vmatprep.subr.mxu0 0.0
    %v517 = vand.u32 %v64, 4294901760
    %v518 = vsub.f32 %v64, %v517
    %519 = vmatpush1.msra.mxu0 %v518
    %520 = vmatprep.subr.mxu0 0.0
    %v521 = vand.u32 %v95, 4294901760
    %v522 = vsub.f32 %v95, %v521
    %523 = vmatpush2.msra.mxu0 %v522
    %524 = vmatprep.subr.mxu0 0.0
    %v525 = vand.u32 %v94, 4294901760
    %v526 = vsub.f32 %v94, %v525
    %527 = vmatpush2.msra.mxu0 %v526
    %528 = vmatprep.subr.mxu0 0.0
    %v529 = vand.u32 %v93, 4294901760
    %v530 = vsub.f32 %v93, %v529
    %531 = vmatpush2.msra.mxu0 %v530
    %532 = vmatprep.subr.mxu0 0.0
    %v533 = vand.u32 %v92, 4294901760
    %v534 = vsub.f32 %v92, %v533
    %535 = vmatpush2.msra.mxu0 %v534
    %536 = vmatprep.subr.mxu0 0.0
    %v537 = vand.u32 %v91, 4294901760
    %v538 = vsub.f32 %v91, %v537
    %539 = vmatpush2.msra.mxu0 %v538
    %540 = vmatprep.subr.mxu0 0.0
    %v541 = vand.u32 %v90, 4294901760
    %v542 = vsub.f32 %v90, %v541
    %543 = vmatpush2.msra.mxu0 %v542
    %544 = vmatprep.subr.mxu0 0.0
    %v545 = vand.u32 %v89, 4294901760
    %v546 = vsub.f32 %v89, %v545
    %547 = vmatpush2.msra.mxu0 %v546
    %548 = vmatprep.subr.mxu0 0.0
    %v549 = vand.u32 %v88, 4294901760
    %v550 = vsub.f32 %v88, %v549
    %551 = vmatpush2.msra.mxu0 %v550
    %552 = vmatprep.subr.mxu0 0.0
    %v553 = vand.u32 %v87, 4294901760
    %v554 = vsub.f32 %v87, %v553
    %555 = vmatpush2.msra.mxu0 %v554
    %556 = vmatprep.subr.mxu0 0.0
    %v557 = vand.u32 %v86, 4294901760
    %v558 = vsub.f32 %v86, %v557
    %559 = vmatpush2.msra.mxu0 %v558
    %560 = vmatprep.subr.mxu0 0.0
    %v561 = vand.u32 %v85, 4294901760
    %v562 = vsub.f32 %v85, %v561
    %563 = vmatpush2.msra.mxu0 %v562
    %564 = vmatprep.subr.mxu0 0.0
    %v565 = vand.u32 %v84, 4294901760
    %v566 = vsub.f32 %v84, %v565
    %567 = vmatpush2.msra.mxu0 %v566
    %568 = vmatprep.subr.mxu0 0.0
    %v569 = vand.u32 %v83, 4294901760
    %v570 = vsub.f32 %v83, %v569
    %571 = vmatpush2.msra.mxu0 %v570
    %572 = vmatprep.subr.mxu0 0.0
    %v573 = vand.u32 %v82, 4294901760
    %v574 = vsub.f32 %v82, %v573
    %575 = vmatpush2.msra.mxu0 %v574
    %576 = vmatprep.subr.mxu0 0.0
    %v577 = vand.u32 %v81, 4294901760
    %v578 = vsub.f32 %v81, %v577
    %579 = vmatpush2.msra.mxu0 %v578
    %580 = vmatprep.subr.mxu0 0.0
    %v581 = vand.u32 %v80, 4294901760
    %v582 = vsub.f32 %v80, %v581
    %583 = vmatpush2.msra.mxu0 %v582
    %v584 = vand.u32 %v62, 4294901760
    %v585 = vsub.f32 %v62, %v584
    %586 = vmatprep.mubr.f32.mxu0 %v585
    %v587 = vand.u32 %v61, 4294901760
    %v588 = vsub.f32 %v61, %v587
    %589 = vmatmul.mubr.f32.gmra.mxu0 %v588
    %v590 = vpop.f32.mrf.mxu0
    %v591 = vadd.f32 %v453, %v590
    %v592 = vpop.f32.mrf.mxu0
    %593 = vdwg.mxu0
    %594 = vmatprep.subr.mxu0 0.0
    %v595 = vand.u32 %v79, 4294901760
    %596 = vmatpush1.msra.mxu0 %v595
    %597 = vmatprep.subr.mxu0 0.0
    %v598 = vand.u32 %v78, 4294901760
    %599 = vmatpush1.msra.mxu0 %v598
    %600 = vmatprep.subr.mxu0 0.0
    %v601 = vand.u32 %v77, 4294901760
    %602 = vmatpush1.msra.mxu0 %v601
    %603 = vmatprep.subr.mxu0 0.0
    %v604 = vand.u32 %v76, 4294901760
    %605 = vmatpush1.msra.mxu0 %v604
    %606 = vmatprep.subr.mxu0 0.0
    %v607 = vand.u32 %v75, 4294901760
    %608 = vmatpush1.msra.mxu0 %v607
    %609 = vmatprep.subr.mxu0 0.0
    %v610 = vand.u32 %v74, 4294901760
    %611 = vmatpush1.msra.mxu0 %v610
    %612 = vmatprep.subr.mxu0 0.0
    %v613 = vand.u32 %v73, 4294901760
    %614 = vmatpush1.msra.mxu0 %v613
    %615 = vmatprep.subr.mxu0 0.0
    %v616 = vand.u32 %v72, 4294901760
    %617 = vmatpush1.msra.mxu0 %v616
    %618 = vmatprep.subr.mxu0 0.0
    %v619 = vand.u32 %v71, 4294901760
    %620 = vmatpush1.msra.mxu0 %v619
    %621 = vmatprep.subr.mxu0 0.0
    %v622 = vand.u32 %v70, 4294901760
    %623 = vmatpush1.msra.mxu0 %v622
    %624 = vmatprep.subr.mxu0 0.0
    %v625 = vand.u32 %v69, 4294901760
    %626 = vmatpush1.msra.mxu0 %v625
    %627 = vmatprep.subr.mxu0 0.0
    %v628 = vand.u32 %v68, 4294901760
    %629 = vmatpush1.msra.mxu0 %v628
    %630 = vmatprep.subr.mxu0 0.0
    %v631 = vand.u32 %v67, 4294901760
    %632 = vmatpush1.msra.mxu0 %v631
    %633 = vmatprep.subr.mxu0 0.0
    %v634 = vand.u32 %v66, 4294901760
    %635 = vmatpush1.msra.mxu0 %v634
    %636 = vmatprep.subr.mxu0 0.0
    %v637 = vand.u32 %v65, 4294901760
    %638 = vmatpush1.msra.mxu0 %v637
    %639 = vmatprep.subr.mxu0 0.0
    %v640 = vand.u32 %v64, 4294901760
    %641 = vmatpush1.msra.mxu0 %v640
    %642 = vmatprep.subr.mxu0 0.0
    %v643 = vand.u32 %v95, 4294901760
    %644 = vmatpush2.msra.mxu0 %v643
    %645 = vmatprep.subr.mxu0 0.0
    %v646 = vand.u32 %v94, 4294901760
    %647 = vmatpush2.msra.mxu0 %v646
    %648 = vmatprep.subr.mxu0 0.0
    %v649 = vand.u32 %v93, 4294901760
    %650 = vmatpush2.msra.mxu0 %v649
    %651 = vmatprep.subr.mxu0 0.0
    %v652 = vand.u32 %v92, 4294901760
    %653 = vmatpush2.msra.mxu0 %v652
    %654 = vmatprep.subr.mxu0 0.0
    %v655 = vand.u32 %v91, 4294901760
    %656 = vmatpush2.msra.mxu0 %v655
    %657 = vmatprep.subr.mxu0 0.0
    %v658 = vand.u32 %v90, 4294901760
    %659 = vmatpush2.msra.mxu0 %v658
    %660 = vmatprep.subr.mxu0 0.0
    %v661 = vand.u32 %v89, 4294901760
    %662 = vmatpush2.msra.mxu0 %v661
    %663 = vmatprep.subr.mxu0 0.0
    %v664 = vand.u32 %v88, 4294901760
    %665 = vmatpush2.msra.mxu0 %v664
    %666 = vmatprep.subr.mxu0 0.0
    %v667 = vand.u32 %v87, 4294901760
    %668 = vmatpush2.msra.mxu0 %v667
    %669 = vmatprep.subr.mxu0 0.0
    %v670 = vand.u32 %v86, 4294901760
    %671 = vmatpush2.msra.mxu0 %v670
    %672 = vmatprep.subr.mxu0 0.0
    %v673 = vand.u32 %v85, 4294901760
    %674 = vmatpush2.msra.mxu0 %v673
    %675 = vmatprep.subr.mxu0 0.0
    %v676 = vand.u32 %v84, 4294901760
    %677 = vmatpush2.msra.mxu0 %v676
    %678 = vmatprep.subr.mxu0 0.0
    %v679 = vand.u32 %v83, 4294901760
    %680 = vmatpush2.msra.mxu0 %v679
    %681 = vmatprep.subr.mxu0 0.0
    %v682 = vand.u32 %v82, 4294901760
    %683 = vmatpush2.msra.mxu0 %v682
    %684 = vmatprep.subr.mxu0 0.0
    %v685 = vand.u32 %v81, 4294901760
    %686 = vmatpush2.msra.mxu0 %v685
    %687 = vmatprep.subr.mxu0 0.0
    %v688 = vand.u32 %v80, 4294901760
    %689 = vmatpush2.msra.mxu0 %v688
    %v690 = vand.u32 %v62, 4294901760
    %v691 = vsub.f32 %v62, %v690
    %v692 = vand.u32 %v691, 4294901760
    %693 = vmatprep.mubr.f32.mxu0 %v692
    %v694 = vand.u32 %v61, 4294901760
    %v695 = vsub.f32 %v61, %v694
    %v696 = vand.u32 %v695, 4294901760
    %697 = vmatmul.mubr.f32.gmra.mxu0 %v696
    %v698 = vpop.f32.mrf.mxu0
    %v699 = vadd.f32 %v591, %v698
    %v700 = vpop.f32.mrf.mxu0
    %701 = vdwg.mxu0
    %702 = vmatprep.subr.mxu0 0.0
    %v703 = vand.u32 %v79, 4294901760
    %v704 = vsub.f32 %v79, %v703
    %v705 = vand.u32 %v704, 4294901760
    %706 = vmatpush1.msra.mxu0 %v705
    %707 = vmatprep.subr.mxu0 0.0
    %v708 = vand.u32 %v78, 4294901760
    %v709 = vsub.f32 %v78, %v708
    %v710 = vand.u32 %v709, 4294901760
    %711 = vmatpush1.msra.mxu0 %v710
    %712 = vmatprep.subr.mxu0 0.0
    %v713 = vand.u32 %v77, 4294901760
    %v714 = vsub.f32 %v77, %v713
    %v715 = vand.u32 %v714, 4294901760
    %716 = vmatpush1.msra.mxu0 %v715
    %717 = vmatprep.subr.mxu0 0.0
    %v718 = vand.u32 %v76, 4294901760
    %v719 = vsub.f32 %v76, %v718
    %v720 = vand.u32 %v719, 4294901760
    %721 = vmatpush1.msra.mxu0 %v720
    %722 = vmatprep.subr.mxu0 0.0
    %v723 = vand.u32 %v75, 4294901760
    %v724 = vsub.f32 %v75, %v723
    %v725 = vand.u32 %v724, 4294901760
    %726 = vmatpush1.msra.mxu0 %v725
    %727 = vmatprep.subr.mxu0 0.0
    %v728 = vand.u32 %v74, 4294901760
    %v729 = vsub.f32 %v74, %v728
    %v730 = vand.u32 %v729, 4294901760
    %731 = vmatpush1.msra.mxu0 %v730
    %732 = vmatprep.subr.mxu0 0.0
    %v733 = vand.u32 %v73, 4294901760
    %v734 = vsub.f32 %v73, %v733
    %v735 = vand.u32 %v734, 4294901760
    %736 = vmatpush1.msra.mxu0 %v735
    %737 = vmatprep.subr.mxu0 0.0
    %v738 = vand.u32 %v72, 4294901760
    %v739 = vsub.f32 %v72, %v738
    %v740 = vand.u32 %v739, 4294901760
    %741 = vmatpush1.msra.mxu0 %v740
    %742 = vmatprep.subr.mxu0 0.0
    %v743 = vand.u32 %v71, 4294901760
    %v744 = vsub.f32 %v71, %v743
    %v745 = vand.u32 %v744, 4294901760
    %746 = vmatpush1.msra.mxu0 %v745
    %747 = vmatprep.subr.mxu0 0.0
    %v748 = vand.u32 %v70, 4294901760
    %v749 = vsub.f32 %v70, %v748
    %v750 = vand.u32 %v749, 4294901760
    %751 = vmatpush1.msra.mxu0 %v750
    %752 = vmatprep.subr.mxu0 0.0
    %v753 = vand.u32 %v69, 4294901760
    %v754 = vsub.f32 %v69, %v753
    %v755 = vand.u32 %v754, 4294901760
    %756 = vmatpush1.msra.mxu0 %v755
    %757 = vmatprep.subr.mxu0 0.0
    %v758 = vand.u32 %v68, 4294901760
    %v759 = vsub.f32 %v68, %v758
    %v760 = vand.u32 %v759, 4294901760
    %761 = vmatpush1.msra.mxu0 %v760
    %762 = vmatprep.subr.mxu0 0.0
    %v763 = vand.u32 %v67, 4294901760
    %v764 = vsub.f32 %v67, %v763
    %v765 = vand.u32 %v764, 4294901760
    %766 = vmatpush1.msra.mxu0 %v765
    %767 = vmatprep.subr.mxu0 0.0
    %v768 = vand.u32 %v66, 4294901760
    %v769 = vsub.f32 %v66, %v768
    %v770 = vand.u32 %v769, 4294901760
    %771 = vmatpush1.msra.mxu0 %v770
    %772 = vmatprep.subr.mxu0 0.0
    %v773 = vand.u32 %v65, 4294901760
    %v774 = vsub.f32 %v65, %v773
    %v775 = vand.u32 %v774, 4294901760
    %776 = vmatpush1.msra.mxu0 %v775
    %777 = vmatprep.subr.mxu0 0.0
    %v778 = vand.u32 %v64, 4294901760
    %v779 = vsub.f32 %v64, %v778
    %v780 = vand.u32 %v779, 4294901760
    %781 = vmatpush1.msra.mxu0 %v780
    %782 = vmatprep.subr.mxu0 0.0
    %v783 = vand.u32 %v95, 4294901760
    %v784 = vsub.f32 %v95, %v783
    %v785 = vand.u32 %v784, 4294901760
    %786 = vmatpush2.msra.mxu0 %v785
    %787 = vmatprep.subr.mxu0 0.0
    %v788 = vand.u32 %v94, 4294901760
    %v789 = vsub.f32 %v94, %v788
    %v790 = vand.u32 %v789, 4294901760
    %791 = vmatpush2.msra.mxu0 %v790
    %792 = vmatprep.subr.mxu0 0.0
    %v793 = vand.u32 %v93, 4294901760
    %v794 = vsub.f32 %v93, %v793
    %v795 = vand.u32 %v794, 4294901760
    %796 = vmatpush2.msra.mxu0 %v795
    %797 = vmatprep.subr.mxu0 0.0
    %v798 = vand.u32 %v92, 4294901760
    %v799 = vsub.f32 %v92, %v798
    %v800 = vand.u32 %v799, 4294901760
    %801 = vmatpush2.msra.mxu0 %v800
    %802 = vmatprep.subr.mxu0 0.0
    %v803 = vand.u32 %v91, 4294901760
    %v804 = vsub.f32 %v91, %v803
    %v805 = vand.u32 %v804, 4294901760
    %806 = vmatpush2.msra.mxu0 %v805
    %807 = vmatprep.subr.mxu0 0.0
    %v808 = vand.u32 %v90, 4294901760
    %v809 = vsub.f32 %v90, %v808
    %v810 = vand.u32 %v809, 4294901760
    %811 = vmatpush2.msra.mxu0 %v810
    %812 = vmatprep.subr.mxu0 0.0
    %v813 = vand.u32 %v89, 4294901760
    %v814 = vsub.f32 %v89, %v813
    %v815 = vand.u32 %v814, 4294901760
    %816 = vmatpush2.msra.mxu0 %v815
    %817 = vmatprep.subr.mxu0 0.0
    %v818 = vand.u32 %v88, 4294901760
    %v819 = vsub.f32 %v88, %v818
    %v820 = vand.u32 %v819, 4294901760
    %821 = vmatpush2.msra.mxu0 %v820
    %822 = vmatprep.subr.mxu0 0.0
    %v823 = vand.u32 %v87, 4294901760
    %v824 = vsub.f32 %v87, %v823
    %v825 = vand.u32 %v824, 4294901760
    %826 = vmatpush2.msra.mxu0 %v825
    %827 = vmatprep.subr.mxu0 0.0
    %v828 = vand.u32 %v86, 4294901760
    %v829 = vsub.f32 %v86, %v828
    %v830 = vand.u32 %v829, 4294901760
    %831 = vmatpush2.msra.mxu0 %v830
    %832 = vmatprep.subr.mxu0 0.0
    %v833 = vand.u32 %v85, 4294901760
    %v834 = vsub.f32 %v85, %v833
    %v835 = vand.u32 %v834, 4294901760
    %836 = vmatpush2.msra.mxu0 %v835
    %837 = vmatprep.subr.mxu0 0.0
    %v838 = vand.u32 %v84, 4294901760
    %v839 = vsub.f32 %v84, %v838
    %v840 = vand.u32 %v839, 4294901760
    %841 = vmatpush2.msra.mxu0 %v840
    %842 = vmatprep.subr.mxu0 0.0
    %v843 = vand.u32 %v83, 4294901760
    %v844 = vsub.f32 %v83, %v843
    %v845 = vand.u32 %v844, 4294901760
    %846 = vmatpush2.msra.mxu0 %v845
    %847 = vmatprep.subr.mxu0 0.0
    %v848 = vand.u32 %v82, 4294901760
    %v849 = vsub.f32 %v82, %v848
    %v850 = vand.u32 %v849, 4294901760
    %851 = vmatpush2.msra.mxu0 %v850
    %852 = vmatprep.subr.mxu0 0.0
    %v853 = vand.u32 %v81, 4294901760
    %v854 = vsub.f32 %v81, %v853
    %v855 = vand.u32 %v854, 4294901760
    %856 = vmatpush2.msra.mxu0 %v855
    %857 = vmatprep.subr.mxu0 0.0
    %v858 = vand.u32 %v80, 4294901760
    %v859 = vsub.f32 %v80, %v858
    %v860 = vand.u32 %v859, 4294901760
    %861 = vmatpush2.msra.mxu0 %v860
    %v862 = vand.u32 %v62, 4294901760
    %863 = vmatprep.mubr.f32.mxu0 %v862
    %v864 = vand.u32 %v61, 4294901760
    %865 = vmatmul.mubr.f32.gmra.mxu0 %v864
    %v866 = vpop.f32.mrf.mxu0
    %v867 = vadd.f32 %v699, %v866
    %v868 = vpop.f32.mrf.mxu0
    %869 = vdwg.mxu0
    %870 = vmatprep.subr.mxu0 0.0
    %v871 = vand.u32 %v79, 4294901760
    %872 = vmatpush1.msra.mxu0 %v871
    %873 = vmatprep.subr.mxu0 0.0
    %v874 = vand.u32 %v78, 4294901760
    %875 = vmatpush1.msra.mxu0 %v874
    %876 = vmatprep.subr.mxu0 0.0
    %v877 = vand.u32 %v77, 4294901760
    %878 = vmatpush1.msra.mxu0 %v877
    %879 = vmatprep.subr.mxu0 0.0
    %v880 = vand.u32 %v76, 4294901760
    %881 = vmatpush1.msra.mxu0 %v880
    %882 = vmatprep.subr.mxu0 0.0
    %v883 = vand.u32 %v75, 4294901760
    %884 = vmatpush1.msra.mxu0 %v883
    %885 = vmatprep.subr.mxu0 0.0
    %v886 = vand.u32 %v74, 4294901760
    %887 = vmatpush1.msra.mxu0 %v886
    %888 = vmatprep.subr.mxu0 0.0
    %v889 = vand.u32 %v73, 4294901760
    %890 = vmatpush1.msra.mxu0 %v889
    %891 = vmatprep.subr.mxu0 0.0
    %v892 = vand.u32 %v72, 4294901760
    %893 = vmatpush1.msra.mxu0 %v892
    %894 = vmatprep.subr.mxu0 0.0
    %v895 = vand.u32 %v71, 4294901760
    %896 = vmatpush1.msra.mxu0 %v895
    %897 = vmatprep.subr.mxu0 0.0
    %v898 = vand.u32 %v70, 4294901760
    %899 = vmatpush1.msra.mxu0 %v898
    %900 = vmatprep.subr.mxu0 0.0
    %v901 = vand.u32 %v69, 4294901760
    %902 = vmatpush1.msra.mxu0 %v901
    %903 = vmatprep.subr.mxu0 0.0
    %v904 = vand.u32 %v68, 4294901760
    %905 = vmatpush1.msra.mxu0 %v904
    %906 = vmatprep.subr.mxu0 0.0
    %v907 = vand.u32 %v67, 4294901760
    %908 = vmatpush1.msra.mxu0 %v907
    %909 = vmatprep.subr.mxu0 0.0
    %v910 = vand.u32 %v66, 4294901760
    %911 = vmatpush1.msra.mxu0 %v910
    %912 = vmatprep.subr.mxu0 0.0
    %v913 = vand.u32 %v65, 4294901760
    %914 = vmatpush1.msra.mxu0 %v913
    %915 = vmatprep.subr.mxu0 0.0
    %v916 = vand.u32 %v64, 4294901760
    %917 = vmatpush1.msra.mxu0 %v916
    %918 = vmatprep.subr.mxu0 0.0
    %v919 = vand.u32 %v95, 4294901760
    %920 = vmatpush2.msra.mxu0 %v919
    %921 = vmatprep.subr.mxu0 0.0
    %v922 = vand.u32 %v94, 4294901760
    %923 = vmatpush2.msra.mxu0 %v922
    %924 = vmatprep.subr.mxu0 0.0
    %v925 = vand.u32 %v93, 4294901760
    %926 = vmatpush2.msra.mxu0 %v925
    %927 = vmatprep.subr.mxu0 0.0
    %v928 = vand.u32 %v92, 4294901760
    %929 = vmatpush2.msra.mxu0 %v928
    %930 = vmatprep.subr.mxu0 0.0
    %v931 = vand.u32 %v91, 4294901760
    %932 = vmatpush2.msra.mxu0 %v931
    %933 = vmatprep.subr.mxu0 0.0
    %v934 = vand.u32 %v90, 4294901760
    %935 = vmatpush2.msra.mxu0 %v934
    %936 = vmatprep.subr.mxu0 0.0
    %v937 = vand.u32 %v89, 4294901760
    %938 = vmatpush2.msra.mxu0 %v937
    %939 = vmatprep.subr.mxu0 0.0
    %v940 = vand.u32 %v88, 4294901760
    %941 = vmatpush2.msra.mxu0 %v940
    %942 = vmatprep.subr.mxu0 0.0
    %v943 = vand.u32 %v87, 4294901760
    %944 = vmatpush2.msra.mxu0 %v943
    %945 = vmatprep.subr.mxu0 0.0
    %v946 = vand.u32 %v86, 4294901760
    %947 = vmatpush2.msra.mxu0 %v946
    %948 = vmatprep.subr.mxu0 0.0
    %v949 = vand.u32 %v85, 4294901760
    %950 = vmatpush2.msra.mxu0 %v949
    %951 = vmatprep.subr.mxu0 0.0
    %v952 = vand.u32 %v84, 4294901760
    %953 = vmatpush2.msra.mxu0 %v952
    %954 = vmatprep.subr.mxu0 0.0
    %v955 = vand.u32 %v83, 4294901760
    %956 = vmatpush2.msra.mxu0 %v955
    %957 = vmatprep.subr.mxu0 0.0
    %v958 = vand.u32 %v82, 4294901760
    %959 = vmatpush2.msra.mxu0 %v958
    %960 = vmatprep.subr.mxu0 0.0
    %v961 = vand.u32 %v81, 4294901760
    %962 = vmatpush2.msra.mxu0 %v961
    %963 = vmatprep.subr.mxu0 0.0
    %v964 = vand.u32 %v80, 4294901760
    %965 = vmatpush2.msra.mxu0 %v964
    %v966 = vand.u32 %v62, 4294901760
    %967 = vmatprep.mubr.f32.mxu0 %v966
    %v968 = vand.u32 %v61, 4294901760
    %969 = vmatmul.mubr.f32.gmra.mxu0 %v968
    %v970 = vpop.f32.mrf.mxu0
    %v971 = vadd.f32 %v867, %v970
    %v972 = vpop.f32.mrf.mxu0
    %973 = vdwg.mxu0
    %974 = vmatprep.subr.mxu0 0.0
    %v975 = vand.u32 %v111, 4294901760
    %976 = vmatpush1.msra.mxu0 %v975
    %977 = vmatprep.subr.mxu0 0.0
    %v978 = vand.u32 %v110, 4294901760
    %979 = vmatpush1.msra.mxu0 %v978
    %980 = vmatprep.subr.mxu0 0.0
    %v981 = vand.u32 %v109, 4294901760
    %982 = vmatpush1.msra.mxu0 %v981
    %983 = vmatprep.subr.mxu0 0.0
    %v984 = vand.u32 %v108, 4294901760
    %985 = vmatpush1.msra.mxu0 %v984
    %986 = vmatprep.subr.mxu0 0.0
    %v987 = vand.u32 %v107, 4294901760
    %988 = vmatpush1.msra.mxu0 %v987
    %989 = vmatprep.subr.mxu0 0.0
    %v990 = vand.u32 %v106, 4294901760
    %991 = vmatpush1.msra.mxu0 %v990
    %992 = vmatprep.subr.mxu0 0.0
    %v993 = vand.u32 %v105, 4294901760
    %994 = vmatpush1.msra.mxu0 %v993
    %995 = vmatprep.subr.mxu0 0.0
    %v996 = vand.u32 %v104, 4294901760
    %997 = vmatpush1.msra.mxu0 %v996
    %998 = vmatprep.subr.mxu0 0.0
    %v999 = vand.u32 %v103, 4294901760
    %1000 = vmatpush1.msra.mxu0 %v999
    %1001 = vmatprep.subr.mxu0 0.0
    %v1002 = vand.u32 %v102, 4294901760
    %1003 = vmatpush1.msra.mxu0 %v1002
    %1004 = vmatprep.subr.mxu0 0.0
    %v1005 = vand.u32 %v101, 4294901760
    %1006 = vmatpush1.msra.mxu0 %v1005
    %1007 = vmatprep.subr.mxu0 0.0
    %v1008 = vand.u32 %v100, 4294901760
    %1009 = vmatpush1.msra.mxu0 %v1008
    %1010 = vmatprep.subr.mxu0 0.0
    %v1011 = vand.u32 %v99, 4294901760
    %1012 = vmatpush1.msra.mxu0 %v1011
    %1013 = vmatprep.subr.mxu0 0.0
    %v1014 = vand.u32 %v98, 4294901760
    %1015 = vmatpush1.msra.mxu0 %v1014
    %1016 = vmatprep.subr.mxu0 0.0
    %v1017 = vand.u32 %v97, 4294901760
    %1018 = vmatpush1.msra.mxu0 %v1017
    %1019 = vmatprep.subr.mxu0 0.0
    %v1020 = vand.u32 %v96, 4294901760
    %1021 = vmatpush1.msra.mxu0 %v1020
    %1022 = vmatprep.subr.mxu0 0.0
    %1023 = vmatpush2.msra.mxu0 0.0
    %1024 = vmatprep.subr.mxu0 0.0
    %1025 = vmatpush2.msra.mxu0 0.0
    %1026 = vmatprep.subr.mxu0 0.0
    %1027 = vmatpush2.msra.mxu0 0.0
    %1028 = vmatprep.subr.mxu0 0.0
    %1029 = vmatpush2.msra.mxu0 0.0
    %1030 = vmatprep.subr.mxu0 0.0
    %1031 = vmatpush2.msra.mxu0 0.0
    %1032 = vmatprep.subr.mxu0 0.0
    %1033 = vmatpush2.msra.mxu0 0.0
    %1034 = vmatprep.subr.mxu0 0.0
    %1035 = vmatpush2.msra.mxu0 0.0
    %1036 = vmatprep.subr.mxu0 0.0
    %1037 = vmatpush2.msra.mxu0 0.0
    %1038 = vmatprep.subr.mxu0 0.0
    %1039 = vmatpush2.msra.mxu0 0.0
    %1040 = vmatprep.subr.mxu0 0.0
    %1041 = vmatpush2.msra.mxu0 0.0
    %1042 = vmatprep.subr.mxu0 0.0
    %1043 = vmatpush2.msra.mxu0 0.0
    %1044 = vmatprep.subr.mxu0 0.0
    %1045 = vmatpush2.msra.mxu0 0.0
    %1046 = vmatprep.subr.mxu0 0.0
    %1047 = vmatpush2.msra.mxu0 0.0
    %1048 = vmatprep.subr.mxu0 0.0
    %1049 = vmatpush2.msra.mxu0 0.0
    %1050 = vmatprep.subr.mxu0 0.0
    %1051 = vmatpush2.msra.mxu0 0.0
    %1052 = vmatprep.subr.mxu0 0.0
    %1053 = vmatpush2.msra.mxu0 0.0
    %1054 = vmatprep.mubr.f32.mxu0 0.0
    %v1055 = vand.u32 %v63, 4294901760
    %v1056 = vsub.f32 %v63, %v1055
    %v1057 = vand.u32 %v1056, 4294901760
    %v1058 = vsub.f32 %v1056, %v1057
    %v1059 = vand.u32 %v1058, 4294901760
    %1060 = vmatmul.mubr.f32.gmra.mxu0 %v1059
    %v1061 = vpop.f32.mrf.mxu0
    %v1062 = vadd.f32 %v971, %v1061
    %v1063 = vpop.f32.mrf.mxu0
    %1064 = vdwg.mxu0
    %1065 = vmatprep.subr.mxu0 0.0
    %v1066 = vand.u32 %v111, 4294901760
    %v1067 = vsub.f32 %v111, %v1066
    %v1068 = vand.u32 %v1067, 4294901760
    %v1069 = vsub.f32 %v1067, %v1068
    %v1070 = vand.u32 %v1069, 4294901760
    %1071 = vmatpush1.msra.mxu0 %v1070
    %1072 = vmatprep.subr.mxu0 0.0
    %v1073 = vand.u32 %v110, 4294901760
    %v1074 = vsub.f32 %v110, %v1073
    %v1075 = vand.u32 %v1074, 4294901760
    %v1076 = vsub.f32 %v1074, %v1075
    %v1077 = vand.u32 %v1076, 4294901760
    %1078 = vmatpush1.msra.mxu0 %v1077
    %1079 = vmatprep.subr.mxu0 0.0
    %v1080 = vand.u32 %v109, 4294901760
    %v1081 = vsub.f32 %v109, %v1080
    %v1082 = vand.u32 %v1081, 4294901760
    %v1083 = vsub.f32 %v1081, %v1082
    %v1084 = vand.u32 %v1083, 4294901760
    %1085 = vmatpush1.msra.mxu0 %v1084
    %1086 = vmatprep.subr.mxu0 0.0
    %v1087 = vand.u32 %v108, 4294901760
    %v1088 = vsub.f32 %v108, %v1087
    %v1089 = vand.u32 %v1088, 4294901760
    %v1090 = vsub.f32 %v1088, %v1089
    %v1091 = vand.u32 %v1090, 4294901760
    %1092 = vmatpush1.msra.mxu0 %v1091
    %1093 = vmatprep.subr.mxu0 0.0
    %v1094 = vand.u32 %v107, 4294901760
    %v1095 = vsub.f32 %v107, %v1094
    %v1096 = vand.u32 %v1095, 4294901760
    %v1097 = vsub.f32 %v1095, %v1096
    %v1098 = vand.u32 %v1097, 4294901760
    %1099 = vmatpush1.msra.mxu0 %v1098
    %1100 = vmatprep.subr.mxu0 0.0
    %v1101 = vand.u32 %v106, 4294901760
    %v1102 = vsub.f32 %v106, %v1101
    %v1103 = vand.u32 %v1102, 4294901760
    %v1104 = vsub.f32 %v1102, %v1103
    %v1105 = vand.u32 %v1104, 4294901760
    %1106 = vmatpush1.msra.mxu0 %v1105
    %1107 = vmatprep.subr.mxu0 0.0
    %v1108 = vand.u32 %v105, 4294901760
    %v1109 = vsub.f32 %v105, %v1108
    %v1110 = vand.u32 %v1109, 4294901760
    %v1111 = vsub.f32 %v1109, %v1110
    %v1112 = vand.u32 %v1111, 4294901760
    %1113 = vmatpush1.msra.mxu0 %v1112
    %1114 = vmatprep.subr.mxu0 0.0
    %v1115 = vand.u32 %v104, 4294901760
    %v1116 = vsub.f32 %v104, %v1115
    %v1117 = vand.u32 %v1116, 4294901760
    %v1118 = vsub.f32 %v1116, %v1117
    %v1119 = vand.u32 %v1118, 4294901760
    %1120 = vmatpush1.msra.mxu0 %v1119
    %1121 = vmatprep.subr.mxu0 0.0
    %v1122 = vand.u32 %v103, 4294901760
    %v1123 = vsub.f32 %v103, %v1122
    %v1124 = vand.u32 %v1123, 4294901760
    %v1125 = vsub.f32 %v1123, %v1124
    %v1126 = vand.u32 %v1125, 4294901760
    %1127 = vmatpush1.msra.mxu0 %v1126
    %1128 = vmatprep.subr.mxu0 0.0
    %v1129 = vand.u32 %v102, 4294901760
    %v1130 = vsub.f32 %v102, %v1129
    %v1131 = vand.u32 %v1130, 4294901760
    %v1132 = vsub.f32 %v1130, %v1131
    %v1133 = vand.u32 %v1132, 4294901760
    %1134 = vmatpush1.msra.mxu0 %v1133
    %1135 = vmatprep.subr.mxu0 0.0
    %v1136 = vand.u32 %v101, 4294901760
    %v1137 = vsub.f32 %v101, %v1136
    %v1138 = vand.u32 %v1137, 4294901760
    %v1139 = vsub.f32 %v1137, %v1138
    %v1140 = vand.u32 %v1139, 4294901760
    %1141 = vmatpush1.msra.mxu0 %v1140
    %1142 = vmatprep.subr.mxu0 0.0
    %v1143 = vand.u32 %v100, 4294901760
    %v1144 = vsub.f32 %v100, %v1143
    %v1145 = vand.u32 %v1144, 4294901760
    %v1146 = vsub.f32 %v1144, %v1145
    %v1147 = vand.u32 %v1146, 4294901760
    %1148 = vmatpush1.msra.mxu0 %v1147
    %1149 = vmatprep.subr.mxu0 0.0
    %v1150 = vand.u32 %v99, 4294901760
    %v1151 = vsub.f32 %v99, %v1150
    %v1152 = vand.u32 %v1151, 4294901760
    %v1153 = vsub.f32 %v1151, %v1152
    %v1154 = vand.u32 %v1153, 4294901760
    %1155 = vmatpush1.msra.mxu0 %v1154
    %1156 = vmatprep.subr.mxu0 0.0
    %v1157 = vand.u32 %v98, 4294901760
    %v1158 = vsub.f32 %v98, %v1157
    %v1159 = vand.u32 %v1158, 4294901760
    %v1160 = vsub.f32 %v1158, %v1159
    %v1161 = vand.u32 %v1160, 4294901760
    %1162 = vmatpush1.msra.mxu0 %v1161
    %1163 = vmatprep.subr.mxu0 0.0
    %v1164 = vand.u32 %v97, 4294901760
    %v1165 = vsub.f32 %v97, %v1164
    %v1166 = vand.u32 %v1165, 4294901760
    %v1167 = vsub.f32 %v1165, %v1166
    %v1168 = vand.u32 %v1167, 4294901760
    %1169 = vmatpush1.msra.mxu0 %v1168
    %1170 = vmatprep.subr.mxu0 0.0
    %v1171 = vand.u32 %v96, 4294901760
    %v1172 = vsub.f32 %v96, %v1171
    %v1173 = vand.u32 %v1172, 4294901760
    %v1174 = vsub.f32 %v1172, %v1173
    %v1175 = vand.u32 %v1174, 4294901760
    %1176 = vmatpush1.msra.mxu0 %v1175
    %1177 = vmatprep.subr.mxu0 0.0
    %1178 = vmatpush2.msra.mxu0 0.0
    %1179 = vmatprep.subr.mxu0 0.0
    %1180 = vmatpush2.msra.mxu0 0.0
    %1181 = vmatprep.subr.mxu0 0.0
    %1182 = vmatpush2.msra.mxu0 0.0
    %1183 = vmatprep.subr.mxu0 0.0
    %1184 = vmatpush2.msra.mxu0 0.0
    %1185 = vmatprep.subr.mxu0 0.0
    %1186 = vmatpush2.msra.mxu0 0.0
    %1187 = vmatprep.subr.mxu0 0.0
    %1188 = vmatpush2.msra.mxu0 0.0
    %1189 = vmatprep.subr.mxu0 0.0
    %1190 = vmatpush2.msra.mxu0 0.0
    %1191 = vmatprep.subr.mxu0 0.0
    %1192 = vmatpush2.msra.mxu0 0.0
    %1193 = vmatprep.subr.mxu0 0.0
    %1194 = vmatpush2.msra.mxu0 0.0
    %1195 = vmatprep.subr.mxu0 0.0
    %1196 = vmatpush2.msra.mxu0 0.0
    %1197 = vmatprep.subr.mxu0 0.0
    %1198 = vmatpush2.msra.mxu0 0.0
    %1199 = vmatprep.subr.mxu0 0.0
    %1200 = vmatpush2.msra.mxu0 0.0
    %1201 = vmatprep.subr.mxu0 0.0
    %1202 = vmatpush2.msra.mxu0 0.0
    %1203 = vmatprep.subr.mxu0 0.0
    %1204 = vmatpush2.msra.mxu0 0.0
    %1205 = vmatprep.subr.mxu0 0.0
    %1206 = vmatpush2.msra.mxu0 0.0
    %1207 = vmatprep.subr.mxu0 0.0
    %1208 = vmatpush2.msra.mxu0 0.0
    %1209 = vmatprep.mubr.f32.mxu0 0.0
    %v1210 = vand.u32 %v63, 4294901760
    %1211 = vmatmul.mubr.f32.gmra.mxu0 %v1210
    %v1212 = vpop.f32.mrf.mxu0
    %v1213 = vadd.f32 %v1062, %v1212
    %v1214 = vpop.f32.mrf.mxu0
    %1215 = vdwg.mxu0
    %1216 = vmatprep.subr.mxu0 0.0
    %v1217 = vand.u32 %v111, 4294901760
    %v1218 = vsub.f32 %v111, %v1217
    %1219 = vmatpush1.msra.mxu0 %v1218
    %1220 = vmatprep.subr.mxu0 0.0
    %v1221 = vand.u32 %v110, 4294901760
    %v1222 = vsub.f32 %v110, %v1221
    %1223 = vmatpush1.msra.mxu0 %v1222
    %1224 = vmatprep.subr.mxu0 0.0
    %v1225 = vand.u32 %v109, 4294901760
    %v1226 = vsub.f32 %v109, %v1225
    %1227 = vmatpush1.msra.mxu0 %v1226
    %1228 = vmatprep.subr.mxu0 0.0
    %v1229 = vand.u32 %v108, 4294901760
    %v1230 = vsub.f32 %v108, %v1229
    %1231 = vmatpush1.msra.mxu0 %v1230
    %1232 = vmatprep.subr.mxu0 0.0
    %v1233 = vand.u32 %v107, 4294901760
    %v1234 = vsub.f32 %v107, %v1233
    %1235 = vmatpush1.msra.mxu0 %v1234
    %1236 = vmatprep.subr.mxu0 0.0
    %v1237 = vand.u32 %v106, 4294901760
    %v1238 = vsub.f32 %v106, %v1237
    %1239 = vmatpush1.msra.mxu0 %v1238
    %1240 = vmatprep.subr.mxu0 0.0
    %v1241 = vand.u32 %v105, 4294901760
    %v1242 = vsub.f32 %v105, %v1241
    %1243 = vmatpush1.msra.mxu0 %v1242
    %1244 = vmatprep.subr.mxu0 0.0
    %v1245 = vand.u32 %v104, 4294901760
    %v1246 = vsub.f32 %v104, %v1245
    %1247 = vmatpush1.msra.mxu0 %v1246
    %1248 = vmatprep.subr.mxu0 0.0
    %v1249 = vand.u32 %v103, 4294901760
    %v1250 = vsub.f32 %v103, %v1249
    %1251 = vmatpush1.msra.mxu0 %v1250
    %1252 = vmatprep.subr.mxu0 0.0
    %v1253 = vand.u32 %v102, 4294901760
    %v1254 = vsub.f32 %v102, %v1253
    %1255 = vmatpush1.msra.mxu0 %v1254
    %1256 = vmatprep.subr.mxu0 0.0
    %v1257 = vand.u32 %v101, 4294901760
    %v1258 = vsub.f32 %v101, %v1257
    %1259 = vmatpush1.msra.mxu0 %v1258
    %1260 = vmatprep.subr.mxu0 0.0
    %v1261 = vand.u32 %v100, 4294901760
    %v1262 = vsub.f32 %v100, %v1261
    %1263 = vmatpush1.msra.mxu0 %v1262
    %1264 = vmatprep.subr.mxu0 0.0
    %v1265 = vand.u32 %v99, 4294901760
    %v1266 = vsub.f32 %v99, %v1265
    %1267 = vmatpush1.msra.mxu0 %v1266
    %1268 = vmatprep.subr.mxu0 0.0
    %v1269 = vand.u32 %v98, 4294901760
    %v1270 = vsub.f32 %v98, %v1269
    %1271 = vmatpush1.msra.mxu0 %v1270
    %1272 = vmatprep.subr.mxu0 0.0
    %v1273 = vand.u32 %v97, 4294901760
    %v1274 = vsub.f32 %v97, %v1273
    %1275 = vmatpush1.msra.mxu0 %v1274
    %1276 = vmatprep.subr.mxu0 0.0
    %v1277 = vand.u32 %v96, 4294901760
    %v1278 = vsub.f32 %v96, %v1277
    %1279 = vmatpush1.msra.mxu0 %v1278
    %1280 = vmatprep.subr.mxu0 0.0
    %1281 = vmatpush2.msra.mxu0 0.0
    %1282 = vmatprep.subr.mxu0 0.0
    %1283 = vmatpush2.msra.mxu0 0.0
    %1284 = vmatprep.subr.mxu0 0.0
    %1285 = vmatpush2.msra.mxu0 0.0
    %1286 = vmatprep.subr.mxu0 0.0
    %1287 = vmatpush2.msra.mxu0 0.0
    %1288 = vmatprep.subr.mxu0 0.0
    %1289 = vmatpush2.msra.mxu0 0.0
    %1290 = vmatprep.subr.mxu0 0.0
    %1291 = vmatpush2.msra.mxu0 0.0
    %1292 = vmatprep.subr.mxu0 0.0
    %1293 = vmatpush2.msra.mxu0 0.0
    %1294 = vmatprep.subr.mxu0 0.0
    %1295 = vmatpush2.msra.mxu0 0.0
    %1296 = vmatprep.subr.mxu0 0.0
    %1297 = vmatpush2.msra.mxu0 0.0
    %1298 = vmatprep.subr.mxu0 0.0
    %1299 = vmatpush2.msra.mxu0 0.0
    %1300 = vmatprep.subr.mxu0 0.0
    %1301 = vmatpush2.msra.mxu0 0.0
    %1302 = vmatprep.subr.mxu0 0.0
    %1303 = vmatpush2.msra.mxu0 0.0
    %1304 = vmatprep.subr.mxu0 0.0
    %1305 = vmatpush2.msra.mxu0 0.0
    %1306 = vmatprep.subr.mxu0 0.0
    %1307 = vmatpush2.msra.mxu0 0.0
    %1308 = vmatprep.subr.mxu0 0.0
    %1309 = vmatpush2.msra.mxu0 0.0
    %1310 = vmatprep.subr.mxu0 0.0
    %1311 = vmatpush2.msra.mxu0 0.0
    %1312 = vmatprep.mubr.f32.mxu0 0.0
    %v1313 = vand.u32 %v63, 4294901760
    %v1314 = vsub.f32 %v63, %v1313
    %1315 = vmatmul.mubr.f32.gmra.mxu0 %v1314
    %v1316 = vpop.f32.mrf.mxu0
    %v1317 = vadd.f32 %v1213, %v1316
    %v1318 = vpop.f32.mrf.mxu0
    %1319 = vdwg.mxu0
    %1320 = vmatprep.subr.mxu0 0.0
    %v1321 = vand.u32 %v111, 4294901760
    %1322 = vmatpush1.msra.mxu0 %v1321
    %1323 = vmatprep.subr.mxu0 0.0
    %v1324 = vand.u32 %v110, 4294901760
    %1325 = vmatpush1.msra.mxu0 %v1324
    %1326 = vmatprep.subr.mxu0 0.0
    %v1327 = vand.u32 %v109, 4294901760
    %1328 = vmatpush1.msra.mxu0 %v1327
    %1329 = vmatprep.subr.mxu0 0.0
    %v1330 = vand.u32 %v108, 4294901760
    %1331 = vmatpush1.msra.mxu0 %v1330
    %1332 = vmatprep.subr.mxu0 0.0
    %v1333 = vand.u32 %v107, 4294901760
    %1334 = vmatpush1.msra.mxu0 %v1333
    %1335 = vmatprep.subr.mxu0 0.0
    %v1336 = vand.u32 %v106, 4294901760
    %1337 = vmatpush1.msra.mxu0 %v1336
    %1338 = vmatprep.subr.mxu0 0.0
    %v1339 = vand.u32 %v105, 4294901760
    %1340 = vmatpush1.msra.mxu0 %v1339
    %1341 = vmatprep.subr.mxu0 0.0
    %v1342 = vand.u32 %v104, 4294901760
    %1343 = vmatpush1.msra.mxu0 %v1342
    %1344 = vmatprep.subr.mxu0 0.0
    %v1345 = vand.u32 %v103, 4294901760
    %1346 = vmatpush1.msra.mxu0 %v1345
    %1347 = vmatprep.subr.mxu0 0.0
    %v1348 = vand.u32 %v102, 4294901760
    %1349 = vmatpush1.msra.mxu0 %v1348
    %1350 = vmatprep.subr.mxu0 0.0
    %v1351 = vand.u32 %v101, 4294901760
    %1352 = vmatpush1.msra.mxu0 %v1351
    %1353 = vmatprep.subr.mxu0 0.0
    %v1354 = vand.u32 %v100, 4294901760
    %1355 = vmatpush1.msra.mxu0 %v1354
    %1356 = vmatprep.subr.mxu0 0.0
    %v1357 = vand.u32 %v99, 4294901760
    %1358 = vmatpush1.msra.mxu0 %v1357
    %1359 = vmatprep.subr.mxu0 0.0
    %v1360 = vand.u32 %v98, 4294901760
    %1361 = vmatpush1.msra.mxu0 %v1360
    %1362 = vmatprep.subr.mxu0 0.0
    %v1363 = vand.u32 %v97, 4294901760
    %1364 = vmatpush1.msra.mxu0 %v1363
    %1365 = vmatprep.subr.mxu0 0.0
    %v1366 = vand.u32 %v96, 4294901760
    %1367 = vmatpush1.msra.mxu0 %v1366
    %1368 = vmatprep.subr.mxu0 0.0
    %1369 = vmatpush2.msra.mxu0 0.0
    %1370 = vmatprep.subr.mxu0 0.0
    %1371 = vmatpush2.msra.mxu0 0.0
    %1372 = vmatprep.subr.mxu0 0.0
    %1373 = vmatpush2.msra.mxu0 0.0
    %1374 = vmatprep.subr.mxu0 0.0
    %1375 = vmatpush2.msra.mxu0 0.0
    %1376 = vmatprep.subr.mxu0 0.0
    %1377 = vmatpush2.msra.mxu0 0.0
    %1378 = vmatprep.subr.mxu0 0.0
    %1379 = vmatpush2.msra.mxu0 0.0
    %1380 = vmatprep.subr.mxu0 0.0
    %1381 = vmatpush2.msra.mxu0 0.0
    %1382 = vmatprep.subr.mxu0 0.0
    %1383 = vmatpush2.msra.mxu0 0.0
    %1384 = vmatprep.subr.mxu0 0.0
    %1385 = vmatpush2.msra.mxu0 0.0
    %1386 = vmatprep.subr.mxu0 0.0
    %1387 = vmatpush2.msra.mxu0 0.0
    %1388 = vmatprep.subr.mxu0 0.0
    %1389 = vmatpush2.msra.mxu0 0.0
    %1390 = vmatprep.subr.mxu0 0.0
    %1391 = vmatpush2.msra.mxu0 0.0
    %1392 = vmatprep.subr.mxu0 0.0
    %1393 = vmatpush2.msra.mxu0 0.0
    %1394 = vmatprep.subr.mxu0 0.0
    %1395 = vmatpush2.msra.mxu0 0.0
    %1396 = vmatprep.subr.mxu0 0.0
    %1397 = vmatpush2.msra.mxu0 0.0
    %1398 = vmatprep.subr.mxu0 0.0
    %1399 = vmatpush2.msra.mxu0 0.0
    %1400 = vmatprep.mubr.f32.mxu0 0.0
    %v1401 = vand.u32 %v63, 4294901760
    %v1402 = vsub.f32 %v63, %v1401
    %v1403 = vand.u32 %v1402, 4294901760
    %1404 = vmatmul.mubr.f32.gmra.mxu0 %v1403
    %v1405 = vpop.f32.mrf.mxu0
    %v1406 = vadd.f32 %v1317, %v1405
    %v1407 = vpop.f32.mrf.mxu0
    %1408 = vdwg.mxu0
    %1409 = vmatprep.subr.mxu0 0.0
    %v1410 = vand.u32 %v111, 4294901760
    %v1411 = vsub.f32 %v111, %v1410
    %v1412 = vand.u32 %v1411, 4294901760
    %1413 = vmatpush1.msra.mxu0 %v1412
    %1414 = vmatprep.subr.mxu0 0.0
    %v1415 = vand.u32 %v110, 4294901760
    %v1416 = vsub.f32 %v110, %v1415
    %v1417 = vand.u32 %v1416, 4294901760
    %1418 = vmatpush1.msra.mxu0 %v1417
    %1419 = vmatprep.subr.mxu0 0.0
    %v1420 = vand.u32 %v109, 4294901760
    %v1421 = vsub.f32 %v109, %v1420
    %v1422 = vand.u32 %v1421, 4294901760
    %1423 = vmatpush1.msra.mxu0 %v1422
    %1424 = vmatprep.subr.mxu0 0.0
    %v1425 = vand.u32 %v108, 4294901760
    %v1426 = vsub.f32 %v108, %v1425
    %v1427 = vand.u32 %v1426, 4294901760
    %1428 = vmatpush1.msra.mxu0 %v1427
    %1429 = vmatprep.subr.mxu0 0.0
    %v1430 = vand.u32 %v107, 4294901760
    %v1431 = vsub.f32 %v107, %v1430
    %v1432 = vand.u32 %v1431, 4294901760
    %1433 = vmatpush1.msra.mxu0 %v1432
    %1434 = vmatprep.subr.mxu0 0.0
    %v1435 = vand.u32 %v106, 4294901760
    %v1436 = vsub.f32 %v106, %v1435
    %v1437 = vand.u32 %v1436, 4294901760
    %1438 = vmatpush1.msra.mxu0 %v1437
    %1439 = vmatprep.subr.mxu0 0.0
    %v1440 = vand.u32 %v105, 4294901760
    %v1441 = vsub.f32 %v105, %v1440
    %v1442 = vand.u32 %v1441, 4294901760
    %1443 = vmatpush1.msra.mxu0 %v1442
    %1444 = vmatprep.subr.mxu0 0.0
    %v1445 = vand.u32 %v104, 4294901760
    %v1446 = vsub.f32 %v104, %v1445
    %v1447 = vand.u32 %v1446, 4294901760
    %1448 = vmatpush1.msra.mxu0 %v1447
    %1449 = vmatprep.subr.mxu0 0.0
    %v1450 = vand.u32 %v103, 4294901760
    %v1451 = vsub.f32 %v103, %v1450
    %v1452 = vand.u32 %v1451, 4294901760
    %1453 = vmatpush1.msra.mxu0 %v1452
    %1454 = vmatprep.subr.mxu0 0.0
    %v1455 = vand.u32 %v102, 4294901760
    %v1456 = vsub.f32 %v102, %v1455
    %v1457 = vand.u32 %v1456, 4294901760
    %1458 = vmatpush1.msra.mxu0 %v1457
    %1459 = vmatprep.subr.mxu0 0.0
    %v1460 = vand.u32 %v101, 4294901760
    %v1461 = vsub.f32 %v101, %v1460
    %v1462 = vand.u32 %v1461, 4294901760
    %1463 = vmatpush1.msra.mxu0 %v1462
    %1464 = vmatprep.subr.mxu0 0.0
    %v1465 = vand.u32 %v100, 4294901760
    %v1466 = vsub.f32 %v100, %v1465
    %v1467 = vand.u32 %v1466, 4294901760
    %1468 = vmatpush1.msra.mxu0 %v1467
    %1469 = vmatprep.subr.mxu0 0.0
    %v1470 = vand.u32 %v99, 4294901760
    %v1471 = vsub.f32 %v99, %v1470
    %v1472 = vand.u32 %v1471, 4294901760
    %1473 = vmatpush1.msra.mxu0 %v1472
    %1474 = vmatprep.subr.mxu0 0.0
    %v1475 = vand.u32 %v98, 4294901760
    %v1476 = vsub.f32 %v98, %v1475
    %v1477 = vand.u32 %v1476, 4294901760
    %1478 = vmatpush1.msra.mxu0 %v1477
    %1479 = vmatprep.subr.mxu0 0.0
    %v1480 = vand.u32 %v97, 4294901760
    %v1481 = vsub.f32 %v97, %v1480
    %v1482 = vand.u32 %v1481, 4294901760
    %1483 = vmatpush1.msra.mxu0 %v1482
    %1484 = vmatprep.subr.mxu0 0.0
    %v1485 = vand.u32 %v96, 4294901760
    %v1486 = vsub.f32 %v96, %v1485
    %v1487 = vand.u32 %v1486, 4294901760
    %1488 = vmatpush1.msra.mxu0 %v1487
    %1489 = vmatprep.subr.mxu0 0.0
    %1490 = vmatpush2.msra.mxu0 0.0
    %1491 = vmatprep.subr.mxu0 0.0
    %1492 = vmatpush2.msra.mxu0 0.0
    %1493 = vmatprep.subr.mxu0 0.0
    %1494 = vmatpush2.msra.mxu0 0.0
    %1495 = vmatprep.subr.mxu0 0.0
    %1496 = vmatpush2.msra.mxu0 0.0
    %1497 = vmatprep.subr.mxu0 0.0
    %1498 = vmatpush2.msra.mxu0 0.0
    %1499 = vmatprep.subr.mxu0 0.0
    %1500 = vmatpush2.msra.mxu0 0.0
    %1501 = vmatprep.subr.mxu0 0.0
    %1502 = vmatpush2.msra.mxu0 0.0
    %1503 = vmatprep.subr.mxu0 0.0
    %1504 = vmatpush2.msra.mxu0 0.0
    %1505 = vmatprep.subr.mxu0 0.0
    %1506 = vmatpush2.msra.mxu0 0.0
    %1507 = vmatprep.subr.mxu0 0.0
    %1508 = vmatpush2.msra.mxu0 0.0
    %1509 = vmatprep.subr.mxu0 0.0
    %1510 = vmatpush2.msra.mxu0 0.0
    %1511 = vmatprep.subr.mxu0 0.0
    %1512 = vmatpush2.msra.mxu0 0.0
    %1513 = vmatprep.subr.mxu0 0.0
    %1514 = vmatpush2.msra.mxu0 0.0
    %1515 = vmatprep.subr.mxu0 0.0
    %1516 = vmatpush2.msra.mxu0 0.0
    %1517 = vmatprep.subr.mxu0 0.0
    %1518 = vmatpush2.msra.mxu0 0.0
    %1519 = vmatprep.subr.mxu0 0.0
    %1520 = vmatpush2.msra.mxu0 0.0
    %1521 = vmatprep.mubr.f32.mxu0 0.0
    %v1522 = vand.u32 %v63, 4294901760
    %1523 = vmatmul.mubr.f32.gmra.mxu0 %v1522
    %v1524 = vpop.f32.mrf.mxu0
    %v1525 = vadd.f32 %v1406, %v1524
    %v1526 = vpop.f32.mrf.mxu0
    %1527 = vdwg.mxu0
    %1528 = vmatprep.subr.mxu0 0.0
    %v1529 = vand.u32 %v111, 4294901760
    %1530 = vmatpush1.msra.mxu0 %v1529
    %1531 = vmatprep.subr.mxu0 0.0
    %v1532 = vand.u32 %v110, 4294901760
    %1533 = vmatpush1.msra.mxu0 %v1532
    %1534 = vmatprep.subr.mxu0 0.0
    %v1535 = vand.u32 %v109, 4294901760
    %1536 = vmatpush1.msra.mxu0 %v1535
    %1537 = vmatprep.subr.mxu0 0.0
    %v1538 = vand.u32 %v108, 4294901760
    %1539 = vmatpush1.msra.mxu0 %v1538
    %1540 = vmatprep.subr.mxu0 0.0
    %v1541 = vand.u32 %v107, 4294901760
    %1542 = vmatpush1.msra.mxu0 %v1541
    %1543 = vmatprep.subr.mxu0 0.0
    %v1544 = vand.u32 %v106, 4294901760
    %1545 = vmatpush1.msra.mxu0 %v1544
    %1546 = vmatprep.subr.mxu0 0.0
    %v1547 = vand.u32 %v105, 4294901760
    %1548 = vmatpush1.msra.mxu0 %v1547
    %1549 = vmatprep.subr.mxu0 0.0
    %v1550 = vand.u32 %v104, 4294901760
    %1551 = vmatpush1.msra.mxu0 %v1550
    %1552 = vmatprep.subr.mxu0 0.0
    %v1553 = vand.u32 %v103, 4294901760
    %1554 = vmatpush1.msra.mxu0 %v1553
    %1555 = vmatprep.subr.mxu0 0.0
    %v1556 = vand.u32 %v102, 4294901760
    %1557 = vmatpush1.msra.mxu0 %v1556
    %1558 = vmatprep.subr.mxu0 0.0
    %v1559 = vand.u32 %v101, 4294901760
    %1560 = vmatpush1.msra.mxu0 %v1559
    %1561 = vmatprep.subr.mxu0 0.0
    %v1562 = vand.u32 %v100, 4294901760
    %1563 = vmatpush1.msra.mxu0 %v1562
    %1564 = vmatprep.subr.mxu0 0.0
    %v1565 = vand.u32 %v99, 4294901760
    %1566 = vmatpush1.msra.mxu0 %v1565
    %1567 = vmatprep.subr.mxu0 0.0
    %v1568 = vand.u32 %v98, 4294901760
    %1569 = vmatpush1.msra.mxu0 %v1568
    %1570 = vmatprep.subr.mxu0 0.0
    %v1571 = vand.u32 %v97, 4294901760
    %1572 = vmatpush1.msra.mxu0 %v1571
    %1573 = vmatprep.subr.mxu0 0.0
    %v1574 = vand.u32 %v96, 4294901760
    %1575 = vmatpush1.msra.mxu0 %v1574
    %1576 = vmatprep.subr.mxu0 0.0
    %1577 = vmatpush2.msra.mxu0 0.0
    %1578 = vmatprep.subr.mxu0 0.0
    %1579 = vmatpush2.msra.mxu0 0.0
    %1580 = vmatprep.subr.mxu0 0.0
    %1581 = vmatpush2.msra.mxu0 0.0
    %1582 = vmatprep.subr.mxu0 0.0
    %1583 = vmatpush2.msra.mxu0 0.0
    %1584 = vmatprep.subr.mxu0 0.0
    %1585 = vmatpush2.msra.mxu0 0.0
    %1586 = vmatprep.subr.mxu0 0.0
    %1587 = vmatpush2.msra.mxu0 0.0
    %1588 = vmatprep.subr.mxu0 0.0
    %1589 = vmatpush2.msra.mxu0 0.0
    %1590 = vmatprep.subr.mxu0 0.0
    %1591 = vmatpush2.msra.mxu0 0.0
    %1592 = vmatprep.subr.mxu0 0.0
    %1593 = vmatpush2.msra.mxu0 0.0
    %1594 = vmatprep.subr.mxu0 0.0
    %1595 = vmatpush2.msra.mxu0 0.0
    %1596 = vmatprep.subr.mxu0 0.0
    %1597 = vmatpush2.msra.mxu0 0.0
    %1598 = vmatprep.subr.mxu0 0.0
    %1599 = vmatpush2.msra.mxu0 0.0
    %1600 = vmatprep.subr.mxu0 0.0
    %1601 = vmatpush2.msra.mxu0 0.0
    %1602 = vmatprep.subr.mxu0 0.0
    %1603 = vmatpush2.msra.mxu0 0.0
    %1604 = vmatprep.subr.mxu0 0.0
    %1605 = vmatpush2.msra.mxu0 0.0
    %1606 = vmatprep.subr.mxu0 0.0
    %1607 = vmatpush2.msra.mxu0 0.0
    %1608 = vmatprep.mubr.f32.mxu0 0.0
    %v1609 = vand.u32 %v63, 4294901760
    %1610 = vmatmul.mubr.f32.gmra.mxu0 %v1609
    %v1611 = vpop.f32.mrf.mxu0
    %v1612 = vadd.f32 %v1525, %v1611
    %v1613 = vpop.f32.mrf.mxu0
    %1614 = vdwg.mxu0
    %v1615 = vrsqrt.pop %v1612
    %v1616 = vmul.f32 %v1612, %v1615
    %vm1617 = vcmp.eq.f32.partialorder %v1612, inf
    %v1618 = vsel %vm1617, %v1612, %v1616
    %vm1619 = vcmp.eq.f32.partialorder %v1612, 0.0
    %v1620 = vand.u32 %v1612, 2147483648
    %v1621 = vsel %vm1619, %v1620, %v1618
    %1622 = vst [vmem:[#allocation8] sm:$0xff] %v1621
    // Predicated region
    $region26: #{tpu_custom_call.1} parent=1 // pred_check
      _
    $region27: #{tpu_custom_call.1} parent=1 // pred_check_branch
      %1624 = sbr.rel (0) target = $region29
    $region28: #{tpu_custom_call.1} parent=1 // pred_region
      %s1626 = ssub.s32 128, 128
      %1627 = vsyncadd [#allocation4], %s1626
      %s1629 = sshll.u32 [#allocation8], 4
      %s1630 = int_to_ptr.vmem [resolvable:$true] %s1629
      %1632 = dma.vmem_to_hbm [thread:$0]  %s1630, 128, %s3, [#allocation4]
    $region29: #{tpu_custom_call.1} parent=1 // pred_fallthru
      _
    // Predicated region
    $region30: #{tpu_custom_call.1} parent=1 // pred_check
      _
    $region31: #{tpu_custom_call.1} parent=1 // pred_check_branch
      %1634 = sbr.rel (0) target = $region33
    $region32: #{tpu_custom_call.1} parent=1 // pred_region
      %1635 = dma.done [#allocation4], 128
    $region33: #{tpu_custom_call.1} parent=1 // pred_fallthru
      _
    %1636 = vsyncpa [#allocation3], 1
    %1637 = vsyncpa [#allocation6], 1
    %1638 = vsyncpa [#allocation4], 1

</llo_original>
